<compile_context>
chip_gen: v5e
topology: v5e:2x2
jax: 0.10.0
libtpu: 0.0.40
codegen_flags: <defaults>
</compile_context>

<pallas_src>
import functools

import jax
import jax.numpy as jnp
from jax import lax
from jax.experimental import pallas as pl
from jax.experimental.pallas import tpu as pltpu

F32 = jnp.float32
MXU_DTYPE = jnp.float32        # keep f32 (see header); bf16 is a TPU-only knob

# Tile preferences.  512-wide adj tiles reach ~85% of the HBM roofline
# (vs ~63% at 256) and quarter the per-step overhead; per-step VMEM stays well
# inside the generation-aware scoped limit below even in f32.
NODE_TILE = 512        # row & contraction tile over the node axis (adj streaming)
ATTR_ROW_TILE = 512    # row tile over the attribute axis
ATTR_K_TILE = 1024     # contraction tile over the node axis in the attr MLP


def _vmem_limit_bytes():
    # Generation-aware scoped-VMEM budget: ~3/4 of physical VMEM capped at
    # 64 MiB (v5e/v6e: 128 MiB -> 64 MiB; v7x: 64 MiB -> 48 MiB).  Falls back
    # to a conservative 48 MiB when the query is unavailable (CPU / interpret).
    try:
        cap = pltpu.get_tpu_info().vmem_capacity_bytes
        return int(min(cap * 3 // 4, 64 * 1024 * 1024))
    except Exception:
        return 48 * 1024 * 1024


VMEM_LIMIT_BYTES = _vmem_limit_bytes()


def _round_up(n, m):
    return ((n + m - 1) // m) * m


def _pick_tile(dim, pref):
    """Return (tile, padded_dim).  Full-dim blocks are always layout-legal;
    otherwise use an (8,128)-aligned preferred tile and zero-pad to a multiple."""
    if dim <= pref:
        return dim, dim
    return pref, _round_up(dim, pref)


def _pad_to(a, shape):
    pads = [(0, t - s) for s, t in zip(a.shape, shape)]
    if all(p == (0, 0) for p in pads):
        return a
    return jnp.pad(a, pads)


def _compiler_params(sem):
    return pltpu.CompilerParams(dimension_semantics=sem,
                                vmem_limit_bytes=VMEM_LIMIT_BYTES)


# --------------------------- node encoder kernel ----------------------------
def _node_encoder_kernel(adj_ref, h_ref, eps_ref, bias_ref,
                         mu_ref, logv_ref, sigma_ref, z_ref,
                         acc, *, S, K, D):
    k = pl.program_id(1)

    @pl.when(k == 0)
    def _():
        acc[...] = jnp.zeros_like(acc)

    # Single wide adj-streaming matmul: the (S+1)*D-wide support slab covers
    # all mu samples and the var head at once (MXU stays full-width).
    acc[...] += jnp.dot(adj_ref[...], h_ref[...], preferred_element_type=F32)

    @pl.when(k == pl.num_programs(1) - 1)
    def _():
        full = acc[...] + bias_ref[...]              # (TN, (S+1)*D)
        mu = full[:, :S * D]
        logv = full[:, S * D:]
        mu_ref[...] = mu
        logv_ref[...] = logv
        sigma = jnp.exp(0.5 * logv)                  # (TN, D)
        for kk in range(K):                          # static unroll (K small)
            sigma_ref[:, kk * D:(kk + 1) * D] = sigma
            z_ref[:, kk * D:(kk + 1) * D] = (
                mu[:, kk * D:(kk + 1) * D]
                + sigma * eps_ref[:, kk * D:(kk + 1) * D])


def node_encoder(adj, h_cat, eps2d, b_mu, b_var, *, S, K, D):
    """Fused node path.  h_cat[:, :S*D] is the hoisted mu support for all
    samples, h_cat[:, S*D:] the var support.  Returns lane-dense 2-D outputs:
    mu [N,S*D], logv [N,D], sigma/z [N,K*D]."""
    N = adj.shape[0]
    TN, Np = _pick_tile(N, NODE_TILE)
    grid = (Np // TN, Np // TN)
    W = (S + 1) * D

    adj_p = _pad_to(adj.astype(MXU_DTYPE), (Np, Np))
    h_p = _pad_to(h_cat.astype(MXU_DTYPE), (Np, W))
    eps_p = _pad_to(eps2d.astype(F32), (Np, K * D))
    bias = jnp.concatenate(
        [jnp.tile(b_mu.reshape(1, D), (1, S)), b_var.reshape(1, D)],
        axis=1).astype(F32)                                         # (1, (S+1)*D)

    kernel = functools.partial(_node_encoder_kernel, S=S, K=K, D=D)
    grid_spec = pltpu.PrefetchScalarGridSpec(
        num_scalar_prefetch=0,
        grid=grid,
        in_specs=[
            pl.BlockSpec((TN, TN), lambda i, k: (i, k)),           # adj tile
            pl.BlockSpec((TN, W), lambda i, k: (k, 0)),            # support slab
            pl.BlockSpec((TN, K * D), lambda i, k: (i, 0)),        # eps (out rows)
            pl.BlockSpec((1, W), lambda i, k: (0, 0)),             # biases
        ],
        out_specs=(
            pl.BlockSpec((TN, S * D), lambda i, k: (i, 0)),
            pl.BlockSpec((TN, D), lambda i, k: (i, 0)),
            pl.BlockSpec((TN, K * D), lambda i, k: (i, 0)),
            pl.BlockSpec((TN, K * D), lambda i, k: (i, 0)),
        ),
        scratch_shapes=[pltpu.VMEM((TN, W), F32)],
    )
    mu2d, logv, sig2d, z2d = pl.pallas_call(
        kernel,
        out_shape=(jax.ShapeDtypeStruct((Np, S * D), F32),
                   jax.ShapeDtypeStruct((Np, D), F32),
                   jax.ShapeDtypeStruct((Np, K * D), F32),
                   jax.ShapeDtypeStruct((Np, K * D), F32)),
        grid_spec=grid_spec,
        compiler_params=_compiler_params(("parallel", "arbitrary")),
    )(adj_p, h_p, eps_p, bias)
    return mu2d[:N], logv[:N], sig2d[:N], z2d[:N]


# --------------------------- attr encoder kernel ----------------------------
def _attr_encoder_kernel(xT_ref, hn_ref, eps_ref,
                         w1cat_ref, b1mu_ref, w2mu_ref, b2mu_ref,
                         b1v_ref, w2v_ref, b2v_ref,
                         mu_ref, logv_ref, sigma_ref, z_ref,
                         acc, *, S, K, D, H):
    k = pl.program_id(1)

    @pl.when(k == 0)
    def _():
        acc[...] = jnp.zeros_like(acc)

    # layer-1 contraction over the (tiled) node axis, mu & var heads at once
    acc[...] += jnp.dot(xT_ref[...], w1cat_ref[...], preferred_element_type=F32)

    @pl.when(k == pl.num_programs(1) - 1)
    def _():
        hx_mu = acc[:, :H]                                         # (TF, H)
        hx_v = acc[:, H:]                                          # (TF, H)

        # var head -> logv, sigma
        h1v = jnp.maximum(hx_v + b1v_ref[...], 0.0)
        logv = jnp.dot(h1v, w2v_ref[...],
                       preferred_element_type=F32) + b2v_ref[...]
        logv_ref[...] = logv
        sigma = jnp.exp(0.5 * logv)                                # (TF, D)

        # mu head, one small H->D matmul per sample (noise term pre-hoisted)
        for s in range(S):                                         # static unroll
            h1 = jnp.maximum(
                hx_mu + hn_ref[:, s * H:(s + 1) * H] + b1mu_ref[...], 0.0)
            mu_s = jnp.dot(h1, w2mu_ref[...],
                           preferred_element_type=F32) + b2mu_ref[...]
            mu_ref[:, s * D:(s + 1) * D] = mu_s
            if s < K:
                sigma_ref[:, s * D:(s + 1) * D] = sigma
                z_ref[:, s * D:(s + 1) * D] = (
                    mu_s + sigma * eps_ref[:, s * D:(s + 1) * D])


def attr_encoder(xT, hn_all, eps2d,
                 w1x_mu, b1_mu, w2_mu, b2_mu,
                 w1_var, b1_var, w2_var, b2_var,
                 *, S, K, D, H):
    Fd, N = xT.shape
    TF, Fp = _pick_tile(Fd, ATTR_ROW_TILE)
    TK, Nc = _pick_tile(N, ATTR_K_TILE)
    grid = (Fp // TF, Nc // TK)

    xT_p = _pad_to(xT.astype(MXU_DTYPE), (Fp, Nc))
    hn_p = _pad_to(hn_all.astype(F32), (Fp, S * H))
    eps_p = _pad_to(eps2d.astype(F32), (Fp, K * D))
    # fuse the node-contracted layer-1 weights of the mu and var heads
    w1cat = _pad_to(jnp.concatenate([w1x_mu, w1_var], axis=1).astype(MXU_DTYPE),
                    (Nc, 2 * H))                                   # (Nc, 2H)

    kernel = functools.partial(_attr_encoder_kernel, S=S, K=K, D=D, H=H)
    grid_spec = pltpu.PrefetchScalarGridSpec(
        num_scalar_prefetch=0,
        grid=grid,
        in_specs=[
            pl.BlockSpec((TF, TK), lambda i, k: (i, k)),           # x^T tile
            pl.BlockSpec((TF, S * H), lambda i, k: (i, 0)),        # hoisted noise@W1
            pl.BlockSpec((TF, K * D), lambda i, k: (i, 0)),        # eps
            pl.BlockSpec((TK, 2 * H), lambda i, k: (k, 0)),        # [W1x_mu | W1_var]
            pl.BlockSpec((1, H), lambda i, k: (0, 0)),             # b1_mu
            pl.BlockSpec((H, D), lambda i, k: (0, 0)),             # W2_mu
            pl.BlockSpec((1, D), lambda i, k: (0, 0)),             # b2_mu
            pl.BlockSpec((1, H), lambda i, k: (0, 0)),             # b1_var
            pl.BlockSpec((H, D), lambda i, k: (0, 0)),             # W2_var
            pl.BlockSpec((1, D), lambda i, k: (0, 0)),             # b2_var
        ],
        out_specs=(
            pl.BlockSpec((TF, S * D), lambda i, k: (i, 0)),
            pl.BlockSpec((TF, D), lambda i, k: (i, 0)),
            pl.BlockSpec((TF, K * D), lambda i, k: (i, 0)),
            pl.BlockSpec((TF, K * D), lambda i, k: (i, 0)),
        ),
        scratch_shapes=[pltpu.VMEM((TF, 2 * H), F32)],
    )
    mu2d, logv, sig2d, z2d = pl.pallas_call(
        kernel,
        out_shape=(jax.ShapeDtypeStruct((Fp, S * D), F32),
                   jax.ShapeDtypeStruct((Fp, D), F32),
                   jax.ShapeDtypeStruct((Fp, K * D), F32),
                   jax.ShapeDtypeStruct((Fp, K * D), F32)),
        grid_spec=grid_spec,
        compiler_params=_compiler_params(("parallel", "arbitrary")),
    )(xT_p, hn_p, eps_p, w1cat,
      b1_mu.reshape(1, H).astype(F32), w2_mu.astype(F32),
      b2_mu.reshape(1, D).astype(F32),
      b1_var.reshape(1, H).astype(F32), w2_var.astype(F32),
      b2_var.reshape(1, D).astype(F32))
    return mu2d[:Fd], logv[:Fd], sig2d[:Fd], z2d[:Fd]


# ------------------------------ decoder kernel ------------------------------
def _decoder_kernel(zu_i_ref, zu_k_ref, sup_ref, adj_ref, b_ref,
                    node_out_ref, attr_out_ref, acc, *, K):
    k = pl.program_id(1)

    @pl.when(k == 0)
    def _():
        acc[...] = jnp.zeros_like(acc)

    adj = adj_ref[...]                                             # (TN, TN)
    for kk in range(K):                                            # K folded in body:
        # Gram tile: z_u[i-tile] @ z_u[k-tile]^T — contract the feature axis on
        # the MXU in-kernel; no HBM-level transpose of z_u.
        node_out_ref[kk] = lax.dot_general(
            zu_i_ref[kk], zu_k_ref[kk], (((1,), (1,)), ((), ())),
            preferred_element_type=F32)
        # decoder GCN: adj tile is streamed ONCE and reused for every sample
        acc[kk] += jnp.dot(adj, sup_ref[kk], preferred_element_type=F32)

    @pl.when(k == pl.num_programs(1) - 1)
    def _():
        for kk in range(K):
            attr_out_ref[kk] = acc[kk] + b_ref[...]


def decoder(adj, support, zu3, b_dec, *, K, D):
    """Fused decoder.  support = [z_u | fine] @ W_dec precomputed per sample
    (shape [K, N, F]); the kernel streams adj once (K folded into the body) and
    returns lane-dense [K, N, N] node logits and [K, N, F] attribute logits."""
    N = adj.shape[0]
    Fd = support.shape[-1]
    TN, Np = _pick_tile(N, NODE_TILE)
    g = Np // TN

    adj_p = _pad_to(adj.astype(MXU_DTYPE), (Np, Np))
    zu_p = _pad_to(zu3.astype(MXU_DTYPE), (K, Np, D))
    sup_p = _pad_to(support.astype(MXU_DTYPE), (K, Np, Fd))
    b = b_dec.reshape(1, Fd).astype(F32)

    grid_spec = pltpu.PrefetchScalarGridSpec(
        num_scalar_prefetch=0,
        grid=(g, g),
        in_specs=[
            pl.BlockSpec((K, TN, D), lambda i, k: (0, i, 0)),      # z_u (out rows)
            pl.BlockSpec((K, TN, D), lambda i, k: (0, k, 0)),      # z_u (contraction)
            pl.BlockSpec((K, TN, Fd), lambda i, k: (0, k, 0)),     # hoisted support
            pl.BlockSpec((TN, TN), lambda i, k: (i, k)),           # adj tile
            pl.BlockSpec((1, Fd), lambda i, k: (0, 0)),            # b_dec
        ],
        out_specs=(
            pl.BlockSpec((K, TN, TN), lambda i, k: (0, i, k)),     # z_u z_u^T
            pl.BlockSpec((K, TN, Fd), lambda i, k: (0, i, 0)),     # decoder GCN
        ),
        scratch_shapes=[pltpu.VMEM((K, TN, Fd), F32)],
    )
    node_logits, attr_logits = pl.pallas_call(
        functools.partial(_decoder_kernel, K=K),
        out_shape=(jax.ShapeDtypeStruct((K, Np, Np), F32),
                   jax.ShapeDtypeStruct((K, Np, Fd), F32)),
        grid_spec=grid_spec,
        compiler_params=_compiler_params(("parallel", "arbitrary")),
    )(zu_p, zu_p, sup_p, adj_p, b)
    return node_logits[:, :N, :N], attr_logits[:, :N, :]


# ------------------------------ parameters ---------------------------------
def _xavier_uniform(key, shape):
    fan_in, fan_out = shape
    limit = (6.0 / (fan_in + fan_out)) ** 0.5
    return jax.random.uniform(key, shape, F32, -limit, limit)


def init_params(key, *, input_dim, num_nodes, num_hidden, out_dim, noise_dim):
    ks = jax.random.split(key, 8)
    p = {}
    # encoder / decoder GCNs (encoder_layers = decoder_layers = 1)
    p["node_mu_w"] = _xavier_uniform(ks[0], (input_dim + noise_dim, out_dim))
    p["node_mu_b"] = jnp.zeros((out_dim,), F32)
    p["node_var_w"] = _xavier_uniform(ks[1], (input_dim, out_dim))
    p["node_var_b"] = jnp.zeros((out_dim,), F32)
    p["dec_w"] = _xavier_uniform(ks[2], (2 * out_dim, input_dim))
    p["dec_b"] = jnp.zeros((input_dim,), F32)
    # DenseModel_B (2 layers) for attributes: xavier weights, zero biases
    p["attr_mu_w1"] = _xavier_uniform(ks[3], (num_nodes + noise_dim, num_hidden))
    p["attr_mu_b1"] = jnp.zeros((num_hidden,), F32)
    p["attr_mu_w2"] = _xavier_uniform(ks[4], (num_hidden, out_dim))
    p["attr_mu_b2"] = jnp.zeros((out_dim,), F32)
    p["attr_var_w1"] = _xavier_uniform(ks[5], (num_nodes, num_hidden))
    p["attr_var_b1"] = jnp.zeros((num_hidden,), F32)
    p["attr_var_w2"] = _xavier_uniform(ks[6], (num_hidden, out_dim))
    p["attr_var_b2"] = jnp.zeros((out_dim,), F32)
    return p


# -------------------------------- forward ----------------------------------
@functools.partial(jax.jit, static_argnames=("K", "J", "noise_dim", "out_dim"))
def graphcim_b_forward(params, adj, x, key, *, K=1, J=1, noise_dim=5, out_dim=64):
    N, Fd = x.shape
    D = out_dim
    nd = noise_dim
    S = K + J
    H = params["attr_mu_b1"].shape[0]

    k_nn, k_ne, k_an, k_ae = jax.random.split(key, 4)

    # ------------------------------ node path ------------------------------
    node_noise = jax.random.bernoulli(k_nn, 0.5, (N, S, nd)).astype(F32)
    eps_node = jax.random.normal(k_ne, (N, K, D), F32)

    # Hoisted GCN supports (tiny vs adj streaming): one (N, (S+1)*D) slab.
    wmu_n = params["node_mu_w"][:nd]                               # (nd, D)
    wmu_x = params["node_mu_w"][nd:]                               # (F,  D)
    hx = jnp.dot(x, wmu_x)                                         # (N, D)
    hn = jnp.einsum("nsk,kd->nsd", node_noise, wmu_n)              # (N, S, D)
    h_mu = (hn + hx[:, None, :]).reshape(N, S * D)
    h_var = jnp.dot(x, params["node_var_w"])                       # (N, D)
    h_cat = jnp.concatenate([h_mu, h_var], axis=1)                 # (N, (S+1)*D)

    node_mu2d, node_logv, node_sig2d, node_z2d = node_encoder(
        adj, h_cat, eps_node.reshape(N, K * D),
        params["node_mu_b"], params["node_var_b"], S=S, K=K, D=D)

    node_mu = node_mu2d.reshape(N, S, D)
    node_mu_iw = node_mu[:, :K, :]
    node_mu_star = node_mu[:, K:, :]
    node_mu_iw_vec = jnp.mean(node_mu_iw, axis=1)
    node_logv_iw = jnp.broadcast_to(node_logv[:, None, :], (N, K, D))
    node_sigma_iw1 = node_sig2d.reshape(N, K, D)
    node_z_samples_iw = node_z2d.reshape(N, K, D)

    merged_node_sigma = jnp.broadcast_to(node_sigma_iw1[:, :, None, :], (N, K, J + 1, D))
    merged_node_z_samples = jnp.broadcast_to(node_z_samples_iw[:, :, None, :], (N, K, J + 1, D))
    node_mu_star1 = jnp.broadcast_to(node_mu_star[:, None, :, :], (N, K, J, D))
    merged_node_mu = jnp.concatenate([node_mu_star1, node_mu_iw[:, :, None, :]], axis=2)

    # ---------------------------- attribute path ---------------------------
    xT = x.T
    attr_noise = jax.random.bernoulli(k_an, 0.5, (Fd, S, nd)).astype(F32)
    eps_attr = jax.random.normal(k_ae, (Fd, K, D), F32)
    # Hoisted per-sample noise projections (contraction depth nd=5 is pure MXU
    # overhead in-kernel); lane-aligned (Fd, S*H) slab.
    hn_all = jnp.einsum("fsk,kh->fsh", attr_noise,
                        params["attr_mu_w1"][:nd]).reshape(Fd, S * H)

    attr_mu2d, attr_logv, attr_sig2d, attr_z2d = attr_encoder(
        xT, hn_all, eps_attr.reshape(Fd, K * D),
        params["attr_mu_w1"][nd:], params["attr_mu_b1"],
        params["attr_mu_w2"], params["attr_mu_b2"],
        params["attr_var_w1"], params["attr_var_b1"],
        params["attr_var_w2"], params["attr_var_b2"],
        S=S, K=K, D=D, H=H)

    attr_mu = attr_mu2d.reshape(Fd, S, D)
    attr_mu_iw = attr_mu[:, :K, :]
    attr_mu_star = attr_mu[:, K:, :]
    attr_mu_iw_vec = jnp.mean(attr_mu_iw, axis=1)
    attr_logv_iw = jnp.broadcast_to(attr_logv[:, None, :], (Fd, K, D))
    attr_sigma_iw1 = attr_sig2d.reshape(Fd, K, D)
    attr_z_samples_iw = attr_z2d.reshape(Fd, K, D)

    merged_attr_sigma = jnp.broadcast_to(attr_sigma_iw1[:, :, None, :], (Fd, K, J + 1, D))
    merged_attr_z_samples = jnp.broadcast_to(attr_z_samples_iw[:, :, None, :], (Fd, K, J + 1, D))
    attr_mu_star1 = jnp.broadcast_to(attr_mu_star[:, None, :, :], (Fd, K, J, D))
    merged_attr_mu = jnp.concatenate([attr_mu_star1, attr_mu_iw[:, :, None, :]], axis=2)

    # -------------------------------- decode -------------------------------
    # dropout p = 0.0 -> identity.
    # Hoisted, (kk, k)-only decoder support:
    #   support = z_u @ Wdec[:D] + L1norm(x) @ z_a @ Wdec[D:]   (K, N, F)
    zu = node_z_samples_iw                                         # (N, K, D)
    za = attr_z_samples_iw                                         # (F, K, D)
    w_top = params["dec_w"][:D]                                    # (D, F)
    w_bot = params["dec_w"][D:]                                    # (D, F)
    x_l1 = x / jnp.maximum(jnp.sum(jnp.abs(x), axis=1, keepdims=True), 1e-12)
    fine = jnp.einsum("nf,fkd->knd", x_l1, za)                     # (K, N, D)
    support = (jnp.einsum("nkd,df->knf", zu, w_top)
               + jnp.einsum("knd,df->knf", fine, w_bot))           # (K, N, F)
    zu3 = jnp.transpose(zu, (1, 0, 2))                             # (K, N, D)

    # TODO(synk): logits_node_normalized (F.normalize p=2) is computed but never
    # used in the torch forward, so it is not reproduced here.
    node_knn, attr_knf = decoder(adj, support, zu3, params["dec_b"], K=K, D=D)
    # Match torch output layout [N, ., K] (trivial for K=1; downstream consumers
    # that can take [K, N, .] should use node_knn/attr_knf directly).
    outputs_u = jnp.transpose(node_knn, (1, 2, 0))                 # [N, N, K]
    outputs_a = jnp.transpose(attr_knf, (1, 2, 0))                 # [N, F, K]

    return (merged_node_mu, merged_node_sigma, merged_node_z_samples, node_logv_iw,
            node_z_samples_iw, merged_attr_mu, merged_attr_sigma, merged_attr_z_samples,
            attr_logv_iw, attr_z_samples_iw, outputs_u, outputs_a,
            node_mu_iw_vec, attr_mu_iw_vec)


# ---------------------------------- main ------------------------------------
if __name__ == "__main__":
    N, F_dim = 16, 8            # num_nodes, input_dim
    H, D, ND = 32, 64, 5        # num_hidden, out_dim, noise_dim
    K, J = 1, 1

    root = jax.random.PRNGKey(0)
    k_param, k_adj, k_x, k_fwd = jax.random.split(root, 4)

    params = init_params(k_param, input_dim=F_dim, num_nodes=N,
                         num_hidden=H, out_dim=D, noise_dim=ND)

    a_raw = jax.random.uniform(k_adj, (N, N), F32)
    adj = 0.5 * (a_raw + a_raw.T) + jnp.eye(N, dtype=F32)   # symmetric dense "adjacency"
    adj = adj / jnp.sum(adj, axis=1, keepdims=True)         # row-normalized
    x = jax.random.normal(k_x, (N, F_dim), F32)

    outs = graphcim_b_forward(params, adj, x, k_fwd, K=K, J=J, noise_dim=ND, out_dim=D)
    outs = jax.block_until_ready(outs)

    expected = [
        (N, K, J + 1, D), (N, K, J + 1, D), (N, K, J + 1, D), (N, K, D), (N, K, D),
        (F_dim, K, J + 1, D), (F_dim, K, J + 1, D), (F_dim, K, J + 1, D), (F_dim, K, D),
        (F_dim, K, D), (N, N, K), (N, F_dim, K), (N, D), (F_dim, D),
    ]
    for o, s in zip(outs, expected):
        assert o.shape == s, (o.shape, s)
        assert bool(jnp.all(jnp.isfinite(o)))

    print("KERNEL_OK")
</pallas_src>

<mosaic_0001>
module attributes {stable_mosaic.version = 11 : i64} {
  func.func @_node_encoder_kernel(%arg0: i32, %arg1: i32, %arg2: memref<16x16xf32, #tpu.memory_space<vmem>>, %arg3: memref<16x192xf32, #tpu.memory_space<vmem>>, %arg4: memref<16x64xf32, #tpu.memory_space<vmem>>, %arg5: memref<1x192xf32, #tpu.memory_space<vmem>>, %arg6: memref<16x128xf32, #tpu.memory_space<vmem>>, %arg7: memref<16x64xf32, #tpu.memory_space<vmem>>, %arg8: memref<16x64xf32, #tpu.memory_space<vmem>>, %arg9: memref<16x64xf32, #tpu.memory_space<vmem>>, %arg10: memref<16x192xf32, #tpu.memory_space<vmem>>) attributes {dimension_semantics = [#tpu.dimension_semantics<parallel>, #tpu.dimension_semantics<arbitrary>], iteration_bounds = array<i64: 1, 1>, scalar_prefetch = 0 : i64, scratch_operands = 1 : i64, tpu.core_type = #tpu.core_type<tc>, window_params = [{transform_indices = @transform_0, window_bounds = array<i64: 16, 16>}, {transform_indices = @transform_1, window_bounds = array<i64: 16, 192>}, {transform_indices = @transform_2, window_bounds = array<i64: 16, 64>}, {pipeline_mode = #tpu.pipeline_mode<synchronous>, transform_indices = @transform_3, window_bounds = array<i64: 1, 192>}, {transform_indices = @transform_4, window_bounds = array<i64: 16, 128>}, {transform_indices = @transform_5, window_bounds = array<i64: 16, 64>}, {transform_indices = @transform_6, window_bounds = array<i64: 16, 64>}, {transform_indices = @transform_7, window_bounds = array<i64: 16, 64>}]} {
    %c0_i32 = arith.constant 0 : i32
    %0 = arith.cmpi eq, %arg1, %c0_i32 : i32
    %1 = arith.extui %0 : i1 to i32
    %c0_i32_0 = arith.constant 0 : i32
    %2 = arith.cmpi ne, %1, %c0_i32_0 : i32
    scf.if %2 {
      %cst_10 = arith.constant 0.000000e+00 : f32
      %12 = vector.broadcast %cst_10 : f32 to vector<16x192xf32>
      %c0_11 = arith.constant 0 : index
      %c0_12 = arith.constant 0 : index
      %13 = vector.load %arg10[%c0_11, %c0_12] : memref<16x192xf32, #tpu.memory_space<vmem>>, vector<16x192xf32>
      tpu.vector_store %arg10[%c0_11, %c0_12], %12 {strides = array<i32>} : memref<16x192xf32, #tpu.memory_space<vmem>>, vector<16x192xf32>,
    } else {
    }
    %c0 = arith.constant 0 : index
    %c0_1 = arith.constant 0 : index
    %3 = vector.load %arg10[%c0, %c0_1] : memref<16x192xf32, #tpu.memory_space<vmem>>, vector<16x192xf32>
    %c0_2 = arith.constant 0 : index
    %c0_3 = arith.constant 0 : index
    %4 = vector.load %arg2[%c0_2, %c0_3] : memref<16x16xf32, #tpu.memory_space<vmem>>, vector<16x16xf32>
    %c0_4 = arith.constant 0 : index
    %c0_5 = arith.constant 0 : index
    %5 = vector.load %arg3[%c0_4, %c0_5] : memref<16x192xf32, #tpu.memory_space<vmem>>, vector<16x192xf32>
    %cst = arith.constant dense<0.000000e+00> : vector<16x192xf32>
    %6 = tpu.matmul %4, %5, %cst {dimension_numbers = #tpu.dot_dimension_numbers<[1], [0], [0], [1], [0, 0, 1, 1], [], []>} : vector<16x16xf32>, vector<16x192xf32>, vector<16x192xf32> -> vector<16x192xf32>
    %7 = arith.addf %3, %6 : vector<16x192xf32>
    %c0_6 = arith.constant 0 : index
    %c0_7 = arith.constant 0 : index
    %8 = vector.load %arg10[%c0_6, %c0_7] : memref<16x192xf32, #tpu.memory_space<vmem>>, vector<16x192xf32>
    tpu.vector_store %arg10[%c0_6, %c0_7], %7 {strides = array<i32>} : memref<16x192xf32, #tpu.memory_space<vmem>>, vector<16x192xf32>,
    %c0_i32_8 = arith.constant 0 : i32
    %9 = arith.cmpi eq, %arg1, %c0_i32_8 : i32
    %10 = arith.extui %9 : i1 to i32
    %c0_i32_9 = arith.constant 0 : i32
    %11 = arith.cmpi ne, %10, %c0_i32_9 : i32
    scf.if %11 {
      %c0_10 = arith.constant 0 : index
      %c0_11 = arith.constant 0 : index
      %12 = vector.load %arg10[%c0_10, %c0_11] : memref<16x192xf32, #tpu.memory_space<vmem>>, vector<16x192xf32>
      %c0_12 = arith.constant 0 : index
      %c0_13 = arith.constant 0 : index
      %13 = vector.load %arg5[%c0_12, %c0_13] : memref<1x192xf32, #tpu.memory_space<vmem>>, vector<1x192xf32>
      %14 = vector.broadcast %13 : vector<1x192xf32> to vector<16x192xf32>
      %15 = arith.addf %12, %14 : vector<16x192xf32>
      %16 = vector.extract_strided_slice %15 {offsets = [0, 0], sizes = [16, 128], strides = [1, 1]} : vector<16x192xf32> to vector<16x128xf32>
      %17 = vector.extract_strided_slice %15 {offsets = [0, 128], sizes = [16, 64], strides = [1, 1]} : vector<16x192xf32> to vector<16x64xf32>
      %c0_14 = arith.constant 0 : index
      %c0_15 = arith.constant 0 : index
      %18 = vector.load %arg6[%c0_14, %c0_15] : memref<16x128xf32, #tpu.memory_space<vmem>>, vector<16x128xf32>
      tpu.vector_store %arg6[%c0_14, %c0_15], %16 {strides = array<i32>} : memref<16x128xf32, #tpu.memory_space<vmem>>, vector<16x128xf32>,
      %c0_16 = arith.constant 0 : index
      %c0_17 = arith.constant 0 : index
      %19 = vector.load %arg7[%c0_16, %c0_17] : memref<16x64xf32, #tpu.memory_space<vmem>>, vector<16x64xf32>
      tpu.vector_store %arg7[%c0_16, %c0_17], %17 {strides = array<i32>} : memref<16x64xf32, #tpu.memory_space<vmem>>, vector<16x64xf32>,
      %cst_18 = arith.constant 5.000000e-01 : f32
      %20 = vector.broadcast %cst_18 : f32 to vector<16x64xf32>
      %21 = arith.mulf %20, %17 : vector<16x64xf32>
      %22 = math.exp %21 : vector<16x64xf32>
      %c0_19 = arith.constant 0 : index
      %c0_20 = arith.constant 0 : index
      %23 = vector.load %arg8[%c0_19, %c0_20] : memref<16x64xf32, #tpu.memory_space<vmem>>, vector<16x64xf32>
      tpu.vector_store %arg8[%c0_19, %c0_20], %22 {strides = array<i32>} : memref<16x64xf32, #tpu.memory_space<vmem>>, vector<16x64xf32>,
      %24 = vector.extract_strided_slice %16 {offsets = [0, 0], sizes = [16, 64], strides = [1, 1]} : vector<16x128xf32> to vector<16x64xf32>
      %c0_21 = arith.constant 0 : index
      %c0_22 = arith.constant 0 : index
      %25 = vector.load %arg4[%c0_21, %c0_22] : memref<16x64xf32, #tpu.memory_space<vmem>>, vector<16x64xf32>
      %26 = arith.mulf %22, %25 : vector<16x64xf32>
      %27 = arith.addf %24, %26 : vector<16x64xf32>
      %c0_23 = arith.constant 0 : index
      %c0_24 = arith.constant 0 : index
      %28 = vector.load %arg9[%c0_23, %c0_24] : memref<16x64xf32, #tpu.memory_space<vmem>>, vector<16x64xf32>
      tpu.vector_store %arg9[%c0_23, %c0_24], %27 {strides = array<i32>} : memref<16x64xf32, #tpu.memory_space<vmem>>, vector<16x64xf32>,
    } else {
    }
    return
  }
  func.func @transform_0(%arg0: i32, %arg1: i32) -> (i32, i32) {
    %c0_i32 = arith.constant 0 : i32
    return %arg0, %arg1 : i32, i32
  }
  func.func @transform_1(%arg0: i32, %arg1: i32) -> (i32, i32) {
    %c0_i32 = arith.constant 0 : i32
    %c0_i32_0 = arith.constant 0 : i32
    return %arg1, %c0_i32 : i32, i32
  }
  func.func @transform_2(%arg0: i32, %arg1: i32) -> (i32, i32) {
    %c0_i32 = arith.constant 0 : i32
    %c0_i32_0 = arith.constant 0 : i32
    return %arg0, %c0_i32 : i32, i32
  }
  func.func @transform_3(%arg0: i32, %arg1: i32) -> (i32, i32) {
    %c0_i32 = arith.constant 0 : i32
    %c0_i32_0 = arith.constant 0 : i32
    %c0_i32_1 = arith.constant 0 : i32
    return %c0_i32, %c0_i32_0 : i32, i32
  }
  func.func @transform_4(%arg0: i32, %arg1: i32) -> (i32, i32) {
    %c0_i32 = arith.constant 0 : i32
    %c0_i32_0 = arith.constant 0 : i32
    return %arg0, %c0_i32 : i32, i32
  }
  func.func @transform_5(%arg0: i32, %arg1: i32) -> (i32, i32) {
    %c0_i32 = arith.constant 0 : i32
    %c0_i32_0 = arith.constant 0 : i32
    return %arg0, %c0_i32 : i32, i32
  }
  func.func @transform_6(%arg0: i32, %arg1: i32) -> (i32, i32) {
    %c0_i32 = arith.constant 0 : i32
    %c0_i32_0 = arith.constant 0 : i32
    return %arg0, %c0_i32 : i32, i32
  }
  func.func @transform_7(%arg0: i32, %arg1: i32) -> (i32, i32) {
    %c0_i32 = arith.constant 0 : i32
    %c0_i32_0 = arith.constant 0 : i32
    return %arg0, %c0_i32 : i32, i32
  }
}

module attributes {stable_mosaic.version = 11 : i64} {
  func.func @_attr_encoder_kernel(%arg0: i32, %arg1: i32, %arg2: memref<8x16xf32, #tpu.memory_space<vmem>>, %arg3: memref<8x64xf32, #tpu.memory_space<vmem>>, %arg4: memref<8x64xf32, #tpu.memory_space<vmem>>, %arg5: memref<16x64xf32, #tpu.memory_space<vmem>>, %arg6: memref<1x32xf32, #tpu.memory_space<vmem>>, %arg7: memref<32x64xf32, #tpu.memory_space<vmem>>, %arg8: memref<1x64xf32, #tpu.memory_space<vmem>>, %arg9: memref<1x32xf32, #tpu.memory_space<vmem>>, %arg10: memref<32x64xf32, #tpu.memory_space<vmem>>, %arg11: memref<1x64xf32, #tpu.memory_space<vmem>>, %arg12: memref<8x128xf32, #tpu.memory_space<vmem>>, %arg13: memref<8x64xf32, #tpu.memory_space<vmem>>, %arg14: memref<8x64xf32, #tpu.memory_space<vmem>>, %arg15: memref<8x64xf32, #tpu.memory_space<vmem>>, %arg16: memref<8x64xf32, #tpu.memory_space<vmem>>) attributes {dimension_semantics = [#tpu.dimension_semantics<parallel>, #tpu.dimension_semantics<arbitrary>], iteration_bounds = array<i64: 1, 1>, scalar_prefetch = 0 : i64, scratch_operands = 1 : i64, tpu.core_type = #tpu.core_type<tc>, window_params = [{transform_indices = @transform_0, window_bounds = array<i64: 8, 16>}, {transform_indices = @transform_1, window_bounds = array<i64: 8, 64>}, {transform_indices = @transform_2, window_bounds = array<i64: 8, 64>}, {transform_indices = @transform_3, window_bounds = array<i64: 16, 64>}, {pipeline_mode = #tpu.pipeline_mode<synchronous>, transform_indices = @transform_4, window_bounds = array<i64: 1, 32>}, {pipeline_mode = #tpu.pipeline_mode<synchronous>, transform_indices = @transform_5, window_bounds = array<i64: 32, 64>}, {pipeline_mode = #tpu.pipeline_mode<synchronous>, transform_indices = @transform_6, window_bounds = array<i64: 1, 64>}, {pipeline_mode = #tpu.pipeline_mode<synchronous>, transform_indices = @transform_7, window_bounds = array<i64: 1, 32>}, {pipeline_mode = #tpu.pipeline_mode<synchronous>, transform_indices = @transform_8, window_bounds = array<i64: 32, 64>}, {pipeline_mode = #tpu.pipeline_mode<synchronous>, transform_indices = @transform_9, window_bounds = array<i64: 1, 64>}, {transform_indices = @transform_10, window_bounds = array<i64: 8, 128>}, {transform_indices = @transform_11, window_bounds = array<i64: 8, 64>}, {transform_indices = @transform_12, window_bounds = array<i64: 8, 64>}, {transform_indices = @transform_13, window_bounds = array<i64: 8, 64>}]} {
    %c0_i32 = arith.constant 0 : i32
    %0 = arith.cmpi eq, %arg1, %c0_i32 : i32
    %1 = arith.extui %0 : i1 to i32
    %c0_i32_0 = arith.constant 0 : i32
    %2 = arith.cmpi ne, %1, %c0_i32_0 : i32
    scf.if %2 {
      %cst_10 = arith.constant 0.000000e+00 : f32
      %12 = vector.broadcast %cst_10 : f32 to vector<8x64xf32>
      %c0_11 = arith.constant 0 : index
      %c0_12 = arith.constant 0 : index
      %13 = vector.load %arg16[%c0_11, %c0_12] : memref<8x64xf32, #tpu.memory_space<vmem>>, vector<8x64xf32>
      tpu.vector_store %arg16[%c0_11, %c0_12], %12 {strides = array<i32>} : memref<8x64xf32, #tpu.memory_space<vmem>>, vector<8x64xf32>,
    } else {
    }
    %c0 = arith.constant 0 : index
    %c0_1 = arith.constant 0 : index
    %3 = vector.load %arg16[%c0, %c0_1] : memref<8x64xf32, #tpu.memory_space<vmem>>, vector<8x64xf32>
    %c0_2 = arith.constant 0 : index
    %c0_3 = arith.constant 0 : index
    %4 = vector.load %arg2[%c0_2, %c0_3] : memref<8x16xf32, #tpu.memory_space<vmem>>, vector<8x16xf32>
    %c0_4 = arith.constant 0 : index
    %c0_5 = arith.constant 0 : index
    %5 = vector.load %arg5[%c0_4, %c0_5] : memref<16x64xf32, #tpu.memory_space<vmem>>, vector<16x64xf32>
    %cst = arith.constant dense<0.000000e+00> : vector<8x64xf32>
    %6 = tpu.matmul %4, %5, %cst {dimension_numbers = #tpu.dot_dimension_numbers<[1], [0], [0], [1], [0, 0, 1, 1], [], []>} : vector<8x16xf32>, vector<16x64xf32>, vector<8x64xf32> -> vector<8x64xf32>
    %7 = arith.addf %3, %6 : vector<8x64xf32>
    %c0_6 = arith.constant 0 : index
    %c0_7 = arith.constant 0 : index
    %8 = vector.load %arg16[%c0_6, %c0_7] : memref<8x64xf32, #tpu.memory_space<vmem>>, vector<8x64xf32>
    tpu.vector_store %arg16[%c0_6, %c0_7], %7 {strides = array<i32>} : memref<8x64xf32, #tpu.memory_space<vmem>>, vector<8x64xf32>,
    %c0_i32_8 = arith.constant 0 : i32
    %9 = arith.cmpi eq, %arg1, %c0_i32_8 : i32
    %10 = arith.extui %9 : i1 to i32
    %c0_i32_9 = arith.constant 0 : i32
    %11 = arith.cmpi ne, %10, %c0_i32_9 : i32
    scf.if %11 {
      %c0_10 = arith.constant 0 : index
      %c0_11 = arith.constant 0 : index
      %12 = vector.load %arg16[%c0_10, %c0_11] : memref<8x64xf32, #tpu.memory_space<vmem>>, vector<8x32xf32>
      %c0_12 = arith.constant 0 : index
      %c32 = arith.constant 32 : index
      %13 = vector.load %arg16[%c0_12, %c32] : memref<8x64xf32, #tpu.memory_space<vmem>>, vector<8x32xf32>
      %c0_13 = arith.constant 0 : index
      %c0_14 = arith.constant 0 : index
      %14 = vector.load %arg9[%c0_13, %c0_14] : memref<1x32xf32, #tpu.memory_space<vmem>>, vector<1x32xf32>
      %15 = vector.broadcast %14 : vector<1x32xf32> to vector<8x32xf32>
      %16 = arith.addf %13, %15 : vector<8x32xf32>
      %cst_15 = arith.constant 0.000000e+00 : f32
      %17 = vector.broadcast %cst_15 : f32 to vector<8x32xf32>
      %18 = arith.maximumf %16, %17 : vector<8x32xf32>
      %c0_16 = arith.constant 0 : index
      %c0_17 = arith.constant 0 : index
      %19 = vector.load %arg10[%c0_16, %c0_17] : memref<32x64xf32, #tpu.memory_space<vmem>>, vector<32x64xf32>
      %cst_18 = arith.constant dense<0.000000e+00> : vector<8x64xf32>
      %20 = tpu.matmul %18, %19, %cst_18 {dimension_numbers = #tpu.dot_dimension_numbers<[1], [0], [0], [1], [0, 0, 1, 1], [], []>} : vector<8x32xf32>, vector<32x64xf32>, vector<8x64xf32> -> vector<8x64xf32>
      %c0_19 = arith.constant 0 : index
      %c0_20 = arith.constant 0 : index
      %21 = vector.load %arg11[%c0_19, %c0_20] : memref<1x64xf32, #tpu.memory_space<vmem>>, vector<1x64xf32>
      %22 = vector.broadcast %21 : vector<1x64xf32> to vector<8x64xf32>
      %23 = arith.addf %20, %22 : vector<8x64xf32>
      %c0_21 = arith.constant 0 : index
      %c0_22 = arith.constant 0 : index
      %24 = vector.load %arg13[%c0_21, %c0_22] : memref<8x64xf32, #tpu.memory_space<vmem>>, vector<8x64xf32>
      tpu.vector_store %arg13[%c0_21, %c0_22], %23 {strides = array<i32>} : memref<8x64xf32, #tpu.memory_space<vmem>>, vector<8x64xf32>,
      %cst_23 = arith.constant 5.000000e-01 : f32
      %25 = vector.broadcast %cst_23 : f32 to vector<8x64xf32>
      %26 = arith.mulf %25, %23 : vector<8x64xf32>
      %27 = math.exp %26 : vector<8x64xf32>
      %c0_24 = arith.constant 0 : index
      %c0_25 = arith.constant 0 : index
      %28 = vector.load %arg3[%c0_24, %c0_25] : memref<8x64xf32, #tpu.memory_space<vmem>>, vector<8x32xf32>
      %29 = arith.addf %12, %28 : vector<8x32xf32>
      %c0_26 = arith.constant 0 : index
      %c0_27 = arith.constant 0 : index
      %30 = vector.load %arg6[%c0_26, %c0_27] : memref<1x32xf32, #tpu.memory_space<vmem>>, vector<1x32xf32>
      %31 = vector.broadcast %30 : vector<1x32xf32> to vector<8x32xf32>
      %32 = arith.addf %29, %31 : vector<8x32xf32>
      %cst_28 = arith.constant 0.000000e+00 : f32
      %33 = vector.broadcast %cst_28 : f32 to vector<8x32xf32>
      %34 = arith.maximumf %32, %33 : vector<8x32xf32>
      %c0_29 = arith.constant 0 : index
      %c0_30 = arith.constant 0 : index
      %35 = vector.load %arg7[%c0_29, %c0_30] : memref<32x64xf32, #tpu.memory_space<vmem>>, vector<32x64xf32>
      %cst_31 = arith.constant dense<0.000000e+00> : vector<8x64xf32>
      %36 = tpu.matmul %34, %35, %cst_31 {dimension_numbers = #tpu.dot_dimension_numbers<[1], [0], [0], [1], [0, 0, 1, 1], [], []>} : vector<8x32xf32>, vector<32x64xf32>, vector<8x64xf32> -> vector<8x64xf32>
      %c0_32 = arith.constant 0 : index
      %c0_33 = arith.constant 0 : index
      %37 = vector.load %arg8[%c0_32, %c0_33] : memref<1x64xf32, #tpu.memory_space<vmem>>, vector<1x64xf32>
      %38 = vector.broadcast %37 : vector<1x64xf32> to vector<8x64xf32>
      %39 = arith.addf %36, %38 : vector<8x64xf32>
      %c0_34 = arith.constant 0 : index
      %c0_35 = arith.constant 0 : index
      %40 = vector.load %arg12[%c0_34, %c0_35] : memref<8x128xf32, #tpu.memory_space<vmem>>, vector<8x64xf32>
      tpu.vector_store %arg12[%c0_34, %c0_35], %39 {strides = array<i32>} : memref<8x128xf32, #tpu.memory_space<vmem>>, vector<8x64xf32>,
      %c0_36 = arith.constant 0 : index
      %c0_37 = arith.constant 0 : index
      %41 = vector.load %arg14[%c0_36, %c0_37] : memref<8x64xf32, #tpu.memory_space<vmem>>, vector<8x64xf32>
      tpu.vector_store %arg14[%c0_36, %c0_37], %27 {strides = array<i32>} : memref<8x64xf32, #tpu.memory_space<vmem>>, vector<8x64xf32>,
      %c0_38 = arith.constant 0 : index
      %c0_39 = arith.constant 0 : index
      %42 = vector.load %arg4[%c0_38, %c0_39] : memref<8x64xf32, #tpu.memory_space<vmem>>, vector<8x64xf32>
      %43 = arith.mulf %27, %42 : vector<8x64xf32>
      %44 = arith.addf %39, %43 : vector<8x64xf32>
      %c0_40 = arith.constant 0 : index
      %c0_41 = arith.constant 0 : index
      %45 = vector.load %arg15[%c0_40, %c0_41] : memref<8x64xf32, #tpu.memory_space<vmem>>, vector<8x64xf32>
      tpu.vector_store %arg15[%c0_40, %c0_41], %44 {strides = array<i32>} : memref<8x64xf32, #tpu.memory_space<vmem>>, vector<8x64xf32>,
      %c0_42 = arith.constant 0 : index
      %c32_43 = arith.constant 32 : index
      %46 = vector.load %arg3[%c0_42, %c32_43] : memref<8x64xf32, #tpu.memory_space<vmem>>, vector<8x32xf32>
      %47 = arith.addf %12, %46 : vector<8x32xf32>
      %c0_44 = arith.constant 0 : index
      %c0_45 = arith.constant 0 : index
      %48 = vector.load %arg6[%c0_44, %c0_45] : memref<1x32xf32, #tpu.memory_space<vmem>>, vector<1x32xf32>
      %49 = vector.broadcast %48 : vector<1x32xf32> to vector<8x32xf32>
      %50 = arith.addf %47, %49 : vector<8x32xf32>
      %cst_46 = arith.constant 0.000000e+00 : f32
      %51 = vector.broadcast %cst_46 : f32 to vector<8x32xf32>
      %52 = arith.maximumf %50, %51 : vector<8x32xf32>
      %c0_47 = arith.constant 0 : index
      %c0_48 = arith.constant 0 : index
      %53 = vector.load %arg7[%c0_47, %c0_48] : memref<32x64xf32, #tpu.memory_space<vmem>>, vector<32x64xf32>
      %cst_49 = arith.constant dense<0.000000e+00> : vector<8x64xf32>
      %54 = tpu.matmul %52, %53, %cst_49 {dimension_numbers = #tpu.dot_dimension_numbers<[1], [0], [0], [1], [0, 0, 1, 1], [], []>} : vector<8x32xf32>, vector<32x64xf32>, vector<8x64xf32> -> vector<8x64xf32>
      %c0_50 = arith.constant 0 : index
      %c0_51 = arith.constant 0 : index
      %55 = vector.load %arg8[%c0_50, %c0_51] : memref<1x64xf32, #tpu.memory_space<vmem>>, vector<1x64xf32>
      %56 = vector.broadcast %55 : vector<1x64xf32> to vector<8x64xf32>
      %57 = arith.addf %54, %56 : vector<8x64xf32>
      %c0_52 = arith.constant 0 : index
      %c64 = arith.constant 64 : index
      %58 = vector.load %arg12[%c0_52, %c64] : memref<8x128xf32, #tpu.memory_space<vmem>>, vector<8x64xf32>
      tpu.vector_store %arg12[%c0_52, %c64], %57 {strides = array<i32>} : memref<8x128xf32, #tpu.memory_space<vmem>>, vector<8x64xf32>,
    } else {
    }
    return
  }
  func.func @transform_0(%arg0: i32, %arg1: i32) -> (i32, i32) {
    %c0_i32 = arith.constant 0 : i32
    return %arg0, %arg1 : i32, i32
  }
  func.func @transform_1(%arg0: i32, %arg1: i32) -> (i32, i32) {
    %c0_i32 = arith.constant 0 : i32
    %c0_i32_0 = arith.constant 0 : i32
    return %arg0, %c0_i32 : i32, i32
  }
  func.func @transform_2(%arg0: i32, %arg1: i32) -> (i32, i32) {
    %c0_i32 = arith.constant 0 : i32
    %c0_i32_0 = arith.constant 0 : i32
    return %arg0, %c0_i32 : i32, i32
  }
  func.func @transform_3(%arg0: i32, %arg1: i32) -> (i32, i32) {
    %c0_i32 = arith.constant 0 : i32
    %c0_i32_0 = arith.constant 0 : i32
    return %arg1, %c0_i32 : i32, i32
  }
  func.func @transform_4(%arg0: i32, %arg1: i32) -> (i32, i32) {
    %c0_i32 = arith.constant 0 : i32
    %c0_i32_0 = arith.constant 0 : i32
    %c0_i32_1 = arith.constant 0 : i32
    return %c0_i32, %c0_i32_0 : i32, i32
  }
  func.func @transform_5(%arg0: i32, %arg1: i32) -> (i32, i32) {
    %c0_i32 = arith.constant 0 : i32
    %c0_i32_0 = arith.constant 0 : i32
    %c0_i32_1 = arith.constant 0 : i32
    return %c0_i32, %c0_i32_0 : i32, i32
  }
  func.func @transform_6(%arg0: i32, %arg1: i32) -> (i32, i32) {
    %c0_i32 = arith.constant 0 : i32
    %c0_i32_0 = arith.constant 0 : i32
    %c0_i32_1 = arith.constant 0 : i32
    return %c0_i32, %c0_i32_0 : i32, i32
  }
  func.func @transform_7(%arg0: i32, %arg1: i32) -> (i32, i32) {
    %c0_i32 = arith.constant 0 : i32
    %c0_i32_0 = arith.constant 0 : i32
    %c0_i32_1 = arith.constant 0 : i32
    return %c0_i32, %c0_i32_0 : i32, i32
  }
  func.func @transform_8(%arg0: i32, %arg1: i32) -> (i32, i32) {
    %c0_i32 = arith.constant 0 : i32
    %c0_i32_0 = arith.constant 0 : i32
    %c0_i32_1 = arith.constant 0 : i32
    return %c0_i32, %c0_i32_0 : i32, i32
  }
  func.func @transform_9(%arg0: i32, %arg1: i32) -> (i32, i32) {
    %c0_i32 = arith.constant 0 : i32
    %c0_i32_0 = arith.constant 0 : i32
    %c0_i32_1 = arith.constant 0 : i32
    return %c0_i32, %c0_i32_0 : i32, i32
  }
  func.func @transform_10(%arg0: i32, %arg1: i32) -> (i32, i32) {
    %c0_i32 = arith.constant 0 : i32
    %c0_i32_0 = arith.constant 0 : i32
    return %arg0, %c0_i32 : i32, i32
  }
  func.func @transform_11(%arg0: i32, %arg1: i32) -> (i32, i32) {
    %c0_i32 = arith.constant 0 : i32
    %c0_i32_0 = arith.constant 0 : i32
    return %arg0, %c0_i32 : i32, i32
  }
  func.func @transform_12(%arg0: i32, %arg1: i32) -> (i32, i32) {
    %c0_i32 = arith.constant 0 : i32
    %c0_i32_0 = arith.constant 0 : i32
    return %arg0, %c0_i32 : i32, i32
  }
  func.func @transform_13(%arg0: i32, %arg1: i32) -> (i32, i32) {
    %c0_i32 = arith.constant 0 : i32
    %c0_i32_0 = arith.constant 0 : i32
    return %arg0, %c0_i32 : i32, i32
  }
}

module attributes {stable_mosaic.version = 11 : i64} {
  func.func @_decoder_kernel(%arg0: i32, %arg1: i32, %arg2: memref<1x16x64xf32, #tpu.memory_space<vmem>>, %arg3: memref<1x16x64xf32, #tpu.memory_space<vmem>>, %arg4: memref<1x16x8xf32, #tpu.memory_space<vmem>>, %arg5: memref<16x16xf32, #tpu.memory_space<vmem>>, %arg6: memref<1x8xf32, #tpu.memory_space<vmem>>, %arg7: memref<1x16x16xf32, #tpu.memory_space<vmem>>, %arg8: memref<1x16x8xf32, #tpu.memory_space<vmem>>, %arg9: memref<1x16x8xf32, #tpu.memory_space<vmem>>) attributes {dimension_semantics = [#tpu.dimension_semantics<parallel>, #tpu.dimension_semantics<arbitrary>], iteration_bounds = array<i64: 1, 1>, scalar_prefetch = 0 : i64, scratch_operands = 1 : i64, tpu.core_type = #tpu.core_type<tc>, window_params = [{transform_indices = @transform_0, window_bounds = array<i64: 1, 16, 64>}, {transform_indices = @transform_1, window_bounds = array<i64: 1, 16, 64>}, {transform_indices = @transform_2, window_bounds = array<i64: 1, 16, 8>}, {transform_indices = @transform_3, window_bounds = array<i64: 16, 16>}, {pipeline_mode = #tpu.pipeline_mode<synchronous>, transform_indices = @transform_4, window_bounds = array<i64: 1, 8>}, {transform_indices = @transform_5, window_bounds = array<i64: 1, 16, 16>}, {transform_indices = @transform_6, window_bounds = array<i64: 1, 16, 8>}]} {
    %c0_i32 = arith.constant 0 : i32
    %0 = arith.cmpi eq, %arg1, %c0_i32 : i32
    %1 = arith.extui %0 : i1 to i32
    %c0_i32_0 = arith.constant 0 : i32
    %2 = arith.cmpi ne, %1, %c0_i32_0 : i32
    scf.if %2 {
      %cst_23 = arith.constant 0.000000e+00 : f32
      %24 = vector.broadcast %cst_23 : f32 to vector<1x16x8xf32>
      %c0_24 = arith.constant 0 : index
      %c0_25 = arith.constant 0 : index
      %c0_26 = arith.constant 0 : index
      %25 = vector.load %arg9[%c0_24, %c0_25, %c0_26] : memref<1x16x8xf32, #tpu.memory_space<vmem>>, vector<1x16x8xf32>
      tpu.vector_store %arg9[%c0_24, %c0_25, %c0_26], %24 {strides = array<i32>} : memref<1x16x8xf32, #tpu.memory_space<vmem>>, vector<1x16x8xf32>,
    } else {
    }
    %c0 = arith.constant 0 : index
    %c0_1 = arith.constant 0 : index
    %3 = vector.load %arg5[%c0, %c0_1] : memref<16x16xf32, #tpu.memory_space<vmem>>, vector<16x16xf32>
    %c0_2 = arith.constant 0 : index
    %c0_3 = arith.constant 0 : index
    %c0_4 = arith.constant 0 : index
    %4 = vector.load %arg2[%c0_2, %c0_3, %c0_4] : memref<1x16x64xf32, #tpu.memory_space<vmem>>, vector<1x16x64xf32>
    %5 = vector.shape_cast %4 : vector<1x16x64xf32> to vector<16x64xf32>
    %c0_5 = arith.constant 0 : index
    %c0_6 = arith.constant 0 : index
    %c0_7 = arith.constant 0 : index
    %6 = vector.load %arg3[%c0_5, %c0_6, %c0_7] : memref<1x16x64xf32, #tpu.memory_space<vmem>>, vector<1x16x64xf32>
    %7 = vector.shape_cast %6 : vector<1x16x64xf32> to vector<16x64xf32>
    %cst = arith.constant dense<0.000000e+00> : vector<16x16xf32>
    %8 = tpu.matmul %5, %7, %cst {dimension_numbers = #tpu.dot_dimension_numbers<[1], [1], [0], [0], [0, 0, 1, 0], [], []>} : vector<16x64xf32>, vector<16x64xf32>, vector<16x16xf32> -> vector<16x16xf32>
    %c0_8 = arith.constant 0 : index
    %c0_9 = arith.constant 0 : index
    %c0_10 = arith.constant 0 : index
    %9 = vector.load %arg7[%c0_8, %c0_9, %c0_10] : memref<1x16x16xf32, #tpu.memory_space<vmem>>, vector<1x16x16xf32>
    %10 = vector.shape_cast %9 : vector<1x16x16xf32> to vector<16x16xf32>
    %11 = vector.shape_cast %8 : vector<16x16xf32> to vector<1x16x16xf32>
    tpu.vector_store %arg7[%c0_8, %c0_9, %c0_10], %11 {strides = array<i32>} : memref<1x16x16xf32, #tpu.memory_space<vmem>>, vector<1x16x16xf32>,
    %c0_11 = arith.constant 0 : index
    %c0_12 = arith.constant 0 : index
    %c0_13 = arith.constant 0 : index
    %12 = vector.load %arg9[%c0_11, %c0_12, %c0_13] : memref<1x16x8xf32, #tpu.memory_space<vmem>>, vector<1x16x8xf32>
    %13 = vector.shape_cast %12 : vector<1x16x8xf32> to vector<16x8xf32>
    %c0_14 = arith.constant 0 : index
    %c0_15 = arith.constant 0 : index
    %c0_16 = arith.constant 0 : index
    %14 = vector.load %arg4[%c0_14, %c0_15, %c0_16] : memref<1x16x8xf32, #tpu.memory_space<vmem>>, vector<1x16x8xf32>
    %15 = vector.shape_cast %14 : vector<1x16x8xf32> to vector<16x8xf32>
    %cst_17 = arith.constant dense<0.000000e+00> : vector<16x8xf32>
    %16 = tpu.matmul %3, %15, %cst_17 {dimension_numbers = #tpu.dot_dimension_numbers<[1], [0], [0], [1], [0, 0, 1, 1], [], []>} : vector<16x16xf32>, vector<16x8xf32>, vector<16x8xf32> -> vector<16x8xf32>
    %17 = arith.addf %13, %16 : vector<16x8xf32>
    %c0_18 = arith.constant 0 : index
    %c0_19 = arith.constant 0 : index
    %c0_20 = arith.constant 0 : index
    %18 = vector.load %arg9[%c0_18, %c0_19, %c0_20] : memref<1x16x8xf32, #tpu.memory_space<vmem>>, vector<1x16x8xf32>
    %19 = vector.shape_cast %18 : vector<1x16x8xf32> to vector<16x8xf32>
    %20 = vector.shape_cast %17 : vector<16x8xf32> to vector<1x16x8xf32>
    tpu.vector_store %arg9[%c0_18, %c0_19, %c0_20], %20 {strides = array<i32>} : memref<1x16x8xf32, #tpu.memory_space<vmem>>, vector<1x16x8xf32>,
    %c0_i32_21 = arith.constant 0 : i32
    %21 = arith.cmpi eq, %arg1, %c0_i32_21 : i32
    %22 = arith.extui %21 : i1 to i32
    %c0_i32_22 = arith.constant 0 : i32
    %23 = arith.cmpi ne, %22, %c0_i32_22 : i32
    scf.if %23 {
      %c0_23 = arith.constant 0 : index
      %c0_24 = arith.constant 0 : index
      %c0_25 = arith.constant 0 : index
      %24 = vector.load %arg9[%c0_23, %c0_24, %c0_25] : memref<1x16x8xf32, #tpu.memory_space<vmem>>, vector<1x16x8xf32>
      %25 = vector.shape_cast %24 : vector<1x16x8xf32> to vector<16x8xf32>
      %c0_26 = arith.constant 0 : index
      %c0_27 = arith.constant 0 : index
      %26 = vector.load %arg6[%c0_26, %c0_27] : memref<1x8xf32, #tpu.memory_space<vmem>>, vector<1x8xf32>
      %27 = vector.broadcast %26 : vector<1x8xf32> to vector<16x8xf32>
      %28 = arith.addf %25, %27 : vector<16x8xf32>
      %c0_28 = arith.constant 0 : index
      %c0_29 = arith.constant 0 : index
      %c0_30 = arith.constant 0 : index
      %29 = vector.load %arg8[%c0_28, %c0_29, %c0_30] : memref<1x16x8xf32, #tpu.memory_space<vmem>>, vector<1x16x8xf32>
      %30 = vector.shape_cast %29 : vector<1x16x8xf32> to vector<16x8xf32>
      %31 = vector.shape_cast %28 : vector<16x8xf32> to vector<1x16x8xf32>
      tpu.vector_store %arg8[%c0_28, %c0_29, %c0_30], %31 {strides = array<i32>} : memref<1x16x8xf32, #tpu.memory_space<vmem>>, vector<1x16x8xf32>,
    } else {
    }
    return
  }
  func.func @transform_0(%arg0: i32, %arg1: i32) -> (i32, i32, i32) {
    %c0_i32 = arith.constant 0 : i32
    %c0_i32_0 = arith.constant 0 : i32
    %c0_i32_1 = arith.constant 0 : i32
    return %c0_i32, %arg0, %c0_i32_0 : i32, i32, i32
  }
  func.func @transform_1(%arg0: i32, %arg1: i32) -> (i32, i32, i32) {
    %c0_i32 = arith.constant 0 : i32
    %c0_i32_0 = arith.constant 0 : i32
    %c0_i32_1 = arith.constant 0 : i32
    return %c0_i32, %arg1, %c0_i32_0 : i32, i32, i32
  }
  func.func @transform_2(%arg0: i32, %arg1: i32) -> (i32, i32, i32) {
    %c0_i32 = arith.constant 0 : i32
    %c0_i32_0 = arith.constant 0 : i32
    %c0_i32_1 = arith.constant 0 : i32
    return %c0_i32, %arg1, %c0_i32_0 : i32, i32, i32
  }
  func.func @transform_3(%arg0: i32, %arg1: i32) -> (i32, i32) {
    %c0_i32 = arith.constant 0 : i32
    return %arg0, %arg1 : i32, i32
  }
  func.func @transform_4(%arg0: i32, %arg1: i32) -> (i32, i32) {
    %c0_i32 = arith.constant 0 : i32
    %c0_i32_0 = arith.constant 0 : i32
    %c0_i32_1 = arith.constant 0 : i32
    return %c0_i32, %c0_i32_0 : i32, i32
  }
  func.func @transform_5(%arg0: i32, %arg1: i32) -> (i32, i32, i32) {
    %c0_i32 = arith.constant 0 : i32
    %c0_i32_0 = arith.constant 0 : i32
    return %c0_i32, %arg0, %arg1 : i32, i32, i32
  }
  func.func @transform_6(%arg0: i32, %arg1: i32) -> (i32, i32, i32) {
    %c0_i32 = arith.constant 0 : i32
    %c0_i32_0 = arith.constant 0 : i32
    %c0_i32_1 = arith.constant 0 : i32
    return %c0_i32, %arg0, %c0_i32_0 : i32, i32, i32
  }
}

</mosaic_0001>

<llo_original>
// kernel: graphcim_b_forward.5
$region0: #{graphcim_b_forward.5}
  #allocation0 [shape = 'u32[]', space=smem, size = 0x4, offset = 0x4, fixed_abs, tag = 'smem constant byte address 0x4 - core index']
  #allocation1 [shape = 'u32[72,128]{1,0:T(1,128)}', space=vmem, size = 0x9000, scoped, tag = 'internal scratch']
  #allocation2 [shape = 'f32[16,192]{1,0:T(8,128)}', space=vmem, size = 0x4000, scoped, tag = 'scratch operand']
  %s0 = inlined_call_operand.vmem [shape: f32[16,16], index: 0, kind: input, shape index: {}]
  %s1 = inlined_call_operand.vmem [shape: f32[16,192], index: 1, kind: input, shape index: {}]
  %s2 = inlined_call_operand.vmem [shape: f32[16,64], index: 2, kind: input, shape index: {}]
  %s3 = inlined_call_operand.vmem [shape: f32[1,192], index: 3, kind: input, shape index: {}]
  %s4 = inlined_call_operand.vmem [shape: f32[16,128], index: 4, kind: output, shape index: {0}]
  %s5 = inlined_call_operand.hbm [shape: f32[16,64], index: 5, kind: output, shape index: {1}]
  %s6 = inlined_call_operand.vmem [shape: f32[16,64], index: 6, kind: output, shape index: {2}]
  %s7 = inlined_call_operand.vmem [shape: f32[16,64], index: 7, kind: output, shape index: {3}]
  %8 = xla_tuple %s4, %s5, %s6, %s7
  %s9 = sld [smem:[#allocation0]]
  $region58: #{graphcim_b_forward.5} parent=0
    _
  %s11 = ssub.s32 1, %s9
  %s12 = scalar_select 0, %s11, %s9
  $region1: #{graphcim_b_forward.5} parent=0
    #allocation3 [shape = 'u8[8192]{0}', space=vmem, size = 0x2000, scoped, tag = 'output window, operand 1, single buffered']
    #allocation4 [shape = 's32[1]{0}', space=sflag, size = 0x4, scoped, tag = 'scoped memory for graphcim_b_forward.5']
    %13 = vsyncpa [#allocation4], 0
    // Predicated region
    $region2: #{graphcim_b_forward.5} parent=1 // pred_check
      _
    $region3: #{graphcim_b_forward.5} parent=1 // pred_check_branch
      %15 = sbr.rel (0) target = $region5
    $region4: #{graphcim_b_forward.5} parent=1 // pred_region
      _
    $region5: #{graphcim_b_forward.5} parent=1 // pred_fallthru
      _
    // Predicated region
    $region6: #{graphcim_b_forward.5} parent=1 // pred_check
      _
    $region7: #{graphcim_b_forward.5} parent=1 // pred_check_branch
      %17 = sbr.rel (0) target = $region9
    $region8: #{graphcim_b_forward.5} parent=1 // pred_region
      _
    $region9: #{graphcim_b_forward.5} parent=1 // pred_fallthru
      _
    // Predicated region
    $region10: #{graphcim_b_forward.5} parent=1 // pred_check
      _
    $region11: #{graphcim_b_forward.5} parent=1 // pred_check_branch
      %19 = sbr.rel (0) target = $region13
    $region12: #{graphcim_b_forward.5} parent=1 // pred_region
      _
    $region13: #{graphcim_b_forward.5} parent=1 // pred_fallthru
      _
    // Predicated region
    $region14: #{graphcim_b_forward.5} parent=1 // pred_check
      _
    $region15: #{graphcim_b_forward.5} parent=1 // pred_check_branch
      %21 = sbr.rel (0) target = $region17
    $region16: #{graphcim_b_forward.5} parent=1 // pred_region
      _
    $region17: #{graphcim_b_forward.5} parent=1 // pred_fallthru
      _
    %p22 = scmp.eq.s32.totalorder 0, 0
    // Predicated region
    $region18: #{graphcim_b_forward.5} parent=1 // pred_check
      %p23 = pneg %p22
    $region19: #{graphcim_b_forward.5} parent=1 // pred_check_branch
      %25 = sbr.rel (%p23) target = $region21
    $region20: #{graphcim_b_forward.5} parent=1 // pred_region
      %26 = vst [vmem:[#allocation2] sm:$0xff] 0.0
      %vm27 = vcmask 523264
      %28 = vst.msk [vmem:[#allocation2 + $0x8] sm:$0xff] %vm27, 0.0
      %29 = vst [vmem:[#allocation2 + $0x10] sm:$0xff] 0.0
      %30 = vst.msk [vmem:[#allocation2 + $0x18] sm:$0xff] %vm27, 0.0
    $region21: #{graphcim_b_forward.5} parent=1 // pred_fallthru
      _
    %v31 = vld [vmem:[#allocation2] sm:$0xff]
    %v32 = vld [vmem:[#allocation2 + $0x8] sm:$0xff]
    %v33 = vld [vmem:[#allocation2 + $0x10] sm:$0xff]
    %v34 = vld [vmem:[#allocation2 + $0x18] sm:$0xff]
    %v35 = vld [vmem:[%s0] sm:$0xff]
    %v36 = vld [vmem:[%s0 + $0x8] sm:$0xff]
    %v37 = vld [vmem:[%s1] sm:$0xff]
    %v38 = vld [vmem:[%s1 + $0x8] sm:$0xff]
    %v39 = vld [vmem:[%s1 + $0x10] sm:$0xff]
    %v40 = vld [vmem:[%s1 + $0x18] sm:$0xff]
    %vm41 = vcmask 130048
    %v43 = vsel %vm41, %v35, 0
    %v46 = vsel %vm41, %v36, 0
    %48 = vmatpush.msra.mxu0 0.0
    %49 = vmatpush.msra.mxu0 0.0
    %50 = vmatpush.msra.mxu0 0.0
    %51 = vmatpush.msra.mxu0 0.0
    %52 = vmatpush.msra.mxu0 0.0
    %53 = vmatpush.msra.mxu0 0.0
    %54 = vmatpush.msra.mxu0 0.0
    %55 = vmatpush.msra.mxu0 0.0
    %56 = vmatpush.msra.mxu0 0.0
    %57 = vmatpush.msra.mxu0 0.0
    %58 = vmatpush.msra.mxu0 0.0
    %59 = vmatpush.msra.mxu0 0.0
    %60 = vmatpush.msra.mxu0 0.0
    %61 = vmatpush.msra.mxu0 0.0
    %62 = vmatpush.msra.mxu0 %v39
    %63 = vmatpush.msra.mxu0 %v37
    %64 = vmatmul.f32.gmra.mxu0 %v43
    %v65 = vpop.f32.mrf.mxu0
    %v66 = vadd.f32 0.0, %v65
    %67 = vmatmul.f32.gmra.mxu0 %v46
    %v68 = vpop.f32.mrf.mxu0
    %v69 = vadd.f32 0.0, %v68
    %70 = vdwg.mxu0
    %71 = vmatpush.msra.mxu0 0.0
    %72 = vmatpush.msra.mxu0 0.0
    %73 = vmatpush.msra.mxu0 0.0
    %74 = vmatpush.msra.mxu0 0.0
    %75 = vmatpush.msra.mxu0 0.0
    %76 = vmatpush.msra.mxu0 0.0
    %77 = vmatpush.msra.mxu0 0.0
    %78 = vmatpush.msra.mxu0 0.0
    %79 = vmatpush.msra.mxu0 0.0
    %80 = vmatpush.msra.mxu0 0.0
    %81 = vmatpush.msra.mxu0 0.0
    %82 = vmatpush.msra.mxu0 0.0
    %83 = vmatpush.msra.mxu0 0.0
    %84 = vmatpush.msra.mxu0 0.0
    %85 = vmatpush.msra.mxu0 %v40
    %86 = vmatpush.msra.mxu0 %v38
    %87 = vmatmul.f32.gmra.mxu0 %v43
    %v88 = vpop.f32.mrf.mxu0
    %v89 = vadd.f32 0.0, %v88
    %90 = vmatmul.f32.gmra.mxu0 %v46
    %v91 = vpop.f32.mrf.mxu0
    %v92 = vadd.f32 0.0, %v91
    %93 = vdwg.mxu0
    %v94 = vadd.f32 %v31, %v66
    %v95 = vadd.f32 %v32, %v89
    %v96 = vadd.f32 %v33, %v69
    %v97 = vadd.f32 %v34, %v92
    %98 = vst [vmem:[#allocation2] sm:$0xff] %v94
    %vm99 = vcmask 523264
    %100 = vst.msk [vmem:[#allocation2 + $0x8] sm:$0xff] %vm99, %v95
    %101 = vst [vmem:[#allocation2 + $0x10] sm:$0xff] %v96
    %102 = vst.msk [vmem:[#allocation2 + $0x18] sm:$0xff] %vm99, %v97
    // Predicated region
    $region22: #{graphcim_b_forward.5} parent=1 // pred_check
      %p103 = pneg %p22
    $region23: #{graphcim_b_forward.5} parent=1 // pred_check_branch
      %105 = sbr.rel (%p103) target = $region25
    $region24: #{graphcim_b_forward.5} parent=1 // pred_region
      %v106 = vld [vmem:[#allocation2] sm:$0xff]
      %v107 = vld [vmem:[#allocation2 + $0x8] sm:$0xff]
      %v108 = vld [vmem:[#allocation2 + $0x10] sm:$0xff]
      %v109 = vld [vmem:[#allocation2 + $0x18] sm:$0xff]
      %v110 = vld [vmem:[%s3] sm:$0x3]
      %v112 = vperm.slane %v110, 0
      %v113 = vperm.slane %v110, 1
      %v116 = vadd.f32 %v106, %v112
      %v117 = vadd.f32 %v107, %v113
      %v118 = vadd.f32 %v108, %v112
      %v119 = vadd.f32 %v109, %v113
      %120 = vst [vmem:[%s4] sm:$0xff] %v116
      %121 = vst [vmem:[%s4 + $0x8] sm:$0xff] %v118
      %122 = vst.msk [vmem:[#allocation3] sm:$0xff] %vm99, %v117
      %123 = vst.msk [vmem:[#allocation3 + $0x8] sm:$0xff] %vm99, %v119
      %v124 = vmul.f32 %v117, 0.5
      %v125 = vmul.f32 %v119, 0.5
      %v126 = vmul.f32 %v124, 1.442695
      %v127 = vpow.pop %v126
      %v128 = vmul.f32 %v125, 1.442695
      %v129 = vpow.pop %v128
      %130 = vst.msk [vmem:[%s6] sm:$0xff] %vm99, %v127
      %131 = vst.msk [vmem:[%s6 + $0x8] sm:$0xff] %vm99, %v129
      %v132 = vld [vmem:[%s2] sm:$0xff]
      %v133 = vld [vmem:[%s2 + $0x8] sm:$0xff]
      %v134 = vmul.f32 %v127, %v132
      %v135 = vmul.f32 %v129, %v133
      %v136 = vadd.f32 %v116, %v134
      %v137 = vadd.f32 %v118, %v135
      %138 = vst.msk [vmem:[%s7] sm:$0xff] %vm99, %v136
      %139 = vst.msk [vmem:[%s7 + $0x8] sm:$0xff] %vm99, %v137
    $region25: #{graphcim_b_forward.5} parent=1 // pred_fallthru
      _
    // Predicated region
    $region26: #{graphcim_b_forward.5} parent=1 // pred_check
      _
    $region27: #{graphcim_b_forward.5} parent=1 // pred_check_branch
      %141 = sbr.rel (0) target = $region29
    $region28: #{graphcim_b_forward.5} parent=1 // pred_region
      _
    $region29: #{graphcim_b_forward.5} parent=1 // pred_fallthru
      _
    // Predicated region
    $region30: #{graphcim_b_forward.5} parent=1 // pred_check
      _
    $region31: #{graphcim_b_forward.5} parent=1 // pred_check_branch
      %143 = sbr.rel (0) target = $region33
    $region32: #{graphcim_b_forward.5} parent=1 // pred_region
      %145 = vsyncadd [#allocation4], 0
      %s146 = sshll.u32 [#allocation3], 4
      %s147 = int_to_ptr.vmem [resolvable:$true] %s146
      %s148 = sshll.u32 %s5, 4
      %s149 = int_to_ptr.hbm [resolvable:$true] %s148
      %154 = dma.vmem_to_hbm [thread:$0]  %s147, 256, %s149, [#allocation4], 128, 128, 8
    $region33: #{graphcim_b_forward.5} parent=1 // pred_fallthru
      _
    // Predicated region
    $region34: #{graphcim_b_forward.5} parent=1 // pred_check
      _
    $region35: #{graphcim_b_forward.5} parent=1 // pred_check_branch
      %156 = sbr.rel (0) target = $region37
    $region36: #{graphcim_b_forward.5} parent=1 // pred_region
      _
    $region37: #{graphcim_b_forward.5} parent=1 // pred_fallthru
      _
    // Predicated region
    $region38: #{graphcim_b_forward.5} parent=1 // pred_check
      _
    $region39: #{graphcim_b_forward.5} parent=1 // pred_check_branch
      %158 = sbr.rel (0) target = $region41
    $region40: #{graphcim_b_forward.5} parent=1 // pred_region
      _
    $region41: #{graphcim_b_forward.5} parent=1 // pred_fallthru
      _
    // Predicated region
    $region42: #{graphcim_b_forward.5} parent=1 // pred_check
      _
    $region43: #{graphcim_b_forward.5} parent=1 // pred_check_branch
      %160 = sbr.rel (0) target = $region45
    $region44: #{graphcim_b_forward.5} parent=1 // pred_region
      _
    $region45: #{graphcim_b_forward.5} parent=1 // pred_fallthru
      _
    // Predicated region
    $region46: #{graphcim_b_forward.5} parent=1 // pred_check
      _
    $region47: #{graphcim_b_forward.5} parent=1 // pred_check_branch
      %162 = sbr.rel (0) target = $region49
    $region48: #{graphcim_b_forward.5} parent=1 // pred_region
      %164 = dma.done [#allocation4], 256
    $region49: #{graphcim_b_forward.5} parent=1 // pred_fallthru
      _
    // Predicated region
    $region50: #{graphcim_b_forward.5} parent=1 // pred_check
      _
    $region51: #{graphcim_b_forward.5} parent=1 // pred_check_branch
      %166 = sbr.rel (0) target = $region53
    $region52: #{graphcim_b_forward.5} parent=1 // pred_region
      _
    $region53: #{graphcim_b_forward.5} parent=1 // pred_fallthru
      _
    // Predicated region
    $region54: #{graphcim_b_forward.5} parent=1 // pred_check
      _
    $region55: #{graphcim_b_forward.5} parent=1 // pred_check_branch
      %168 = sbr.rel (0) target = $region57
    $region56: #{graphcim_b_forward.5} parent=1 // pred_region
      _
    $region57: #{graphcim_b_forward.5} parent=1 // pred_fallthru
      _
    %169 = vsyncpa [#allocation4], 1

// kernel: graphcim_b_forward.6
$region0: #{graphcim_b_forward.6}
  #allocation0 [shape = 'u32[]', space=smem, size = 0x4, offset = 0x4, fixed_abs, tag = 'smem constant byte address 0x4 - core index']
  #allocation1 [shape = 'u32[72,128]{1,0:T(1,128)}', space=vmem, size = 0x9000, scoped, tag = 'internal scratch']
  #allocation2 [shape = 'f32[8,64]{1,0:T(8,128)}', space=vmem, size = 0x1000, scoped, tag = 'scratch operand']
  %s0 = inlined_call_operand.vmem [shape: f32[8,16], index: 0, kind: input, shape index: {}]
  %s1 = inlined_call_operand.vmem [shape: f32[8,64], index: 1, kind: input, shape index: {}]
  %s2 = inlined_call_operand.vmem [shape: f32[8,64], index: 2, kind: input, shape index: {}]
  %s3 = inlined_call_operand.vmem [shape: f32[16,64], index: 3, kind: input, shape index: {}]
  %s4 = inlined_call_operand.vmem [shape: f32[1,32], index: 4, kind: input, shape index: {}]
  %s5 = inlined_call_operand.vmem [shape: f32[32,64], index: 5, kind: input, shape index: {}]
  %s6 = inlined_call_operand.vmem [shape: f32[1,64], index: 6, kind: input, shape index: {}]
  %s7 = inlined_call_operand.vmem [shape: f32[1,32], index: 7, kind: input, shape index: {}]
  %s8 = inlined_call_operand.vmem [shape: f32[32,64], index: 8, kind: input, shape index: {}]
  %s9 = inlined_call_operand.vmem [shape: f32[1,64], index: 9, kind: input, shape index: {}]
  %s10 = inlined_call_operand.vmem [shape: f32[8,128], index: 10, kind: output, shape index: {0}]
  %s11 = inlined_call_operand.hbm [shape: f32[8,64], index: 11, kind: output, shape index: {1}]
  %s12 = inlined_call_operand.vmem [shape: f32[8,64], index: 12, kind: output, shape index: {2}]
  %s13 = inlined_call_operand.vmem [shape: f32[8,64], index: 13, kind: output, shape index: {3}]
  %14 = xla_tuple %s10, %s11, %s12, %s13
  %s15 = sld [smem:[#allocation0]]
  $region82: #{graphcim_b_forward.6} parent=0
    _
  %s17 = ssub.s32 1, %s15
  %s18 = scalar_select 0, %s17, %s15
  $region1: #{graphcim_b_forward.6} parent=0
    #allocation3 [shape = 'u8[4096]{0}', space=vmem, size = 0x1000, scoped, tag = 'output window, operand 1, single buffered']
    #allocation4 [shape = 's32[1]{0}', space=sflag, size = 0x4, scoped, tag = 'scoped memory for graphcim_b_forward.6']
    %19 = vsyncpa [#allocation4], 0
    // Predicated region
    $region2: #{graphcim_b_forward.6} parent=1 // pred_check
      _
    $region3: #{graphcim_b_forward.6} parent=1 // pred_check_branch
      %21 = sbr.rel (0) target = $region5
    $region4: #{graphcim_b_forward.6} parent=1 // pred_region
      _
    $region5: #{graphcim_b_forward.6} parent=1 // pred_fallthru
      _
    // Predicated region
    $region6: #{graphcim_b_forward.6} parent=1 // pred_check
      _
    $region7: #{graphcim_b_forward.6} parent=1 // pred_check_branch
      %23 = sbr.rel (0) target = $region9
    $region8: #{graphcim_b_forward.6} parent=1 // pred_region
      _
    $region9: #{graphcim_b_forward.6} parent=1 // pred_fallthru
      _
    // Predicated region
    $region10: #{graphcim_b_forward.6} parent=1 // pred_check
      _
    $region11: #{graphcim_b_forward.6} parent=1 // pred_check_branch
      %25 = sbr.rel (0) target = $region13
    $region12: #{graphcim_b_forward.6} parent=1 // pred_region
      _
    $region13: #{graphcim_b_forward.6} parent=1 // pred_fallthru
      _
    // Predicated region
    $region14: #{graphcim_b_forward.6} parent=1 // pred_check
      _
    $region15: #{graphcim_b_forward.6} parent=1 // pred_check_branch
      %27 = sbr.rel (0) target = $region17
    $region16: #{graphcim_b_forward.6} parent=1 // pred_region
      _
    $region17: #{graphcim_b_forward.6} parent=1 // pred_fallthru
      _
    // Predicated region
    $region18: #{graphcim_b_forward.6} parent=1 // pred_check
      _
    $region19: #{graphcim_b_forward.6} parent=1 // pred_check_branch
      %29 = sbr.rel (0) target = $region21
    $region20: #{graphcim_b_forward.6} parent=1 // pred_region
      _
    $region21: #{graphcim_b_forward.6} parent=1 // pred_fallthru
      _
    // Predicated region
    $region22: #{graphcim_b_forward.6} parent=1 // pred_check
      _
    $region23: #{graphcim_b_forward.6} parent=1 // pred_check_branch
      %31 = sbr.rel (0) target = $region25
    $region24: #{graphcim_b_forward.6} parent=1 // pred_region
      _
    $region25: #{graphcim_b_forward.6} parent=1 // pred_fallthru
      _
    // Predicated region
    $region26: #{graphcim_b_forward.6} parent=1 // pred_check
      _
    $region27: #{graphcim_b_forward.6} parent=1 // pred_check_branch
      %33 = sbr.rel (0) target = $region29
    $region28: #{graphcim_b_forward.6} parent=1 // pred_region
      _
    $region29: #{graphcim_b_forward.6} parent=1 // pred_fallthru
      _
    // Predicated region
    $region30: #{graphcim_b_forward.6} parent=1 // pred_check
      _
    $region31: #{graphcim_b_forward.6} parent=1 // pred_check_branch
      %35 = sbr.rel (0) target = $region33
    $region32: #{graphcim_b_forward.6} parent=1 // pred_region
      _
    $region33: #{graphcim_b_forward.6} parent=1 // pred_fallthru
      _
    // Predicated region
    $region34: #{graphcim_b_forward.6} parent=1 // pred_check
      _
    $region35: #{graphcim_b_forward.6} parent=1 // pred_check_branch
      %37 = sbr.rel (0) target = $region37
    $region36: #{graphcim_b_forward.6} parent=1 // pred_region
      _
    $region37: #{graphcim_b_forward.6} parent=1 // pred_fallthru
      _
    // Predicated region
    $region38: #{graphcim_b_forward.6} parent=1 // pred_check
      _
    $region39: #{graphcim_b_forward.6} parent=1 // pred_check_branch
      %39 = sbr.rel (0) target = $region41
    $region40: #{graphcim_b_forward.6} parent=1 // pred_region
      _
    $region41: #{graphcim_b_forward.6} parent=1 // pred_fallthru
      _
    %p40 = scmp.eq.s32.totalorder 0, 0
    // Predicated region
    $region42: #{graphcim_b_forward.6} parent=1 // pred_check
      %p41 = pneg %p40
    $region43: #{graphcim_b_forward.6} parent=1 // pred_check_branch
      %43 = sbr.rel (%p41) target = $region45
    $region44: #{graphcim_b_forward.6} parent=1 // pred_region
      %vm44 = vcmask 523264
      %45 = vst.msk [vmem:[#allocation2] sm:$0xff] %vm44, 0.0
    $region45: #{graphcim_b_forward.6} parent=1 // pred_fallthru
      _
    %v46 = vld [vmem:[#allocation2] sm:$0xff]
    %v47 = vld [vmem:[%s0] sm:$0xff]
    %v48 = vld [vmem:[%s3] sm:$0xff]
    %v49 = vld [vmem:[%s3 + $0x8] sm:$0xff]
    %vm50 = vcmask 130048
    %v52 = vsel %vm50, %v47, 0
    %54 = vmatpush.msra.mxu0 0.0
    %55 = vmatpush.msra.mxu0 0.0
    %56 = vmatpush.msra.mxu0 0.0
    %57 = vmatpush.msra.mxu0 0.0
    %58 = vmatpush.msra.mxu0 0.0
    %59 = vmatpush.msra.mxu0 0.0
    %60 = vmatpush.msra.mxu0 0.0
    %61 = vmatpush.msra.mxu0 0.0
    %62 = vmatpush.msra.mxu0 0.0
    %63 = vmatpush.msra.mxu0 0.0
    %64 = vmatpush.msra.mxu0 0.0
    %65 = vmatpush.msra.mxu0 0.0
    %66 = vmatpush.msra.mxu0 0.0
    %67 = vmatpush.msra.mxu0 0.0
    %68 = vmatpush.msra.mxu0 %v49
    %69 = vmatpush.msra.mxu0 %v48
    %70 = vmatmul.f32.gmra.mxu0 %v52
    %v71 = vpop.f32.mrf.mxu0
    %v72 = vadd.f32 0.0, %v71
    %73 = vdwg.mxu0
    %v74 = vadd.f32 %v46, %v72
    %vm75 = vcmask 523264
    %76 = vst.msk [vmem:[#allocation2] sm:$0xff] %vm75, %v74
    // Predicated region
    $region46: #{graphcim_b_forward.6} parent=1 // pred_check
      %p77 = pneg %p40
    $region47: #{graphcim_b_forward.6} parent=1 // pred_check_branch
      %79 = sbr.rel (%p77) target = $region49
    $region48: #{graphcim_b_forward.6} parent=1 // pred_region
      %v80 = vld [vmem:[#allocation2] sm:$0xff]
      %v81 = vld [vmem:[%s7] sm:$0x1]
      %v83 = vperm.slane %v81, 0
      %84 = vrot.lane.b32.xlu0 %v83, 32
      %v85 = vpop.permute.xlu0 %84
      %v87 = vadd.f32 %v80, %v85
      %v88 = vmax.f32 %v87, 0.0
      %v89 = vld [vmem:[%s8] sm:$0xff]
      %v90 = vld [vmem:[%s8 + $0x8] sm:$0xff]
      %v91 = vld [vmem:[%s8 + $0x10] sm:$0xff]
      %v92 = vld [vmem:[%s8 + $0x18] sm:$0xff]
      %v93 = vld [vmem:[%s9] sm:$0x1]
      %v95 = vperm.slane %v93, 0
      %98 = vrot.lane.b32.xlu0 %v88, 96
      %v99 = vpop.permute.xlu0 %98
      %vm100 = vcmask 261120
      %v101 = vsel %vm100, %v99, 0
      %103 = vmatpush.msra.mxu0 0.0
      %104 = vmatpush.msra.mxu0 0.0
      %105 = vmatpush.msra.mxu0 0.0
      %106 = vmatpush.msra.mxu0 0.0
      %107 = vmatpush.msra.mxu0 0.0
      %108 = vmatpush.msra.mxu0 0.0
      %109 = vmatpush.msra.mxu0 0.0
      %110 = vmatpush.msra.mxu0 0.0
      %111 = vmatpush.msra.mxu0 0.0
      %112 = vmatpush.msra.mxu0 0.0
      %113 = vmatpush.msra.mxu0 0.0
      %114 = vmatpush.msra.mxu0 0.0
      %115 = vmatpush.msra.mxu0 %v92
      %116 = vmatpush.msra.mxu0 %v91
      %117 = vmatpush.msra.mxu0 %v90
      %118 = vmatpush.msra.mxu0 %v89
      %119 = vmatmul.f32.gmra.mxu0 %v101
      %v120 = vpop.f32.mrf.mxu0
      %v121 = vadd.f32 %v95, %v120
      %122 = vdwg.mxu0
      %123 = vst.msk [vmem:[#allocation3] sm:$0xff] %vm75, %v121
      %v124 = vmul.f32 %v121, 0.5
      %v125 = vmul.f32 %v124, 1.442695
      %v126 = vpow.pop %v125
      %v127 = vld [vmem:[%s1] sm:$0xff]
      %v128 = vadd.f32 %v80, %v127
      %v129 = vld [vmem:[%s4] sm:$0x1]
      %v131 = vperm.slane %v129, 0
      %v133 = vadd.f32 %v128, %v131
      %v134 = vmax.f32 %v133, 0.0
      %v135 = vld [vmem:[%s5] sm:$0xff]
      %v136 = vld [vmem:[%s5 + $0x8] sm:$0xff]
      %v137 = vld [vmem:[%s5 + $0x10] sm:$0xff]
      %v138 = vld [vmem:[%s5 + $0x18] sm:$0xff]
      %v139 = vld [vmem:[%s6] sm:$0x1]
      %v141 = vperm.slane %v139, 0
      %v144 = vsel %vm100, %v134, 0
      %146 = vmatpush.msra.mxu0 0.0
      %147 = vmatpush.msra.mxu0 0.0
      %148 = vmatpush.msra.mxu0 0.0
      %149 = vmatpush.msra.mxu0 0.0
      %150 = vmatpush.msra.mxu0 0.0
      %151 = vmatpush.msra.mxu0 0.0
      %152 = vmatpush.msra.mxu0 0.0
      %153 = vmatpush.msra.mxu0 0.0
      %154 = vmatpush.msra.mxu0 0.0
      %155 = vmatpush.msra.mxu0 0.0
      %156 = vmatpush.msra.mxu0 0.0
      %157 = vmatpush.msra.mxu0 0.0
      %158 = vmatpush.msra.mxu0 %v138
      %159 = vmatpush.msra.mxu0 %v137
      %160 = vmatpush.msra.mxu0 %v136
      %161 = vmatpush.msra.mxu0 %v135
      %162 = vmatmul.f32.gmra.mxu0 %v144
      %v163 = vpop.f32.mrf.mxu0
      %v164 = vadd.f32 %v141, %v163
      %165 = vdwg.mxu0
      %166 = vst.msk [vmem:[%s10] sm:$0xff] %vm75, %v164
      %167 = vst.msk [vmem:[%s12] sm:$0xff] %vm75, %v126
      %v168 = vld [vmem:[%s2] sm:$0xff]
      %v169 = vmul.f32 %v126, %v168
      %v170 = vadd.f32 %v164, %v169
      %171 = vst.msk [vmem:[%s13] sm:$0xff] %vm75, %v170
      %v172 = vld [vmem:[%s1] sm:$0xff]
      %174 = vrot.lane.b32.xlu0 %v172, 96
      %v175 = vpop.permute.xlu0 %174
      %v177 = vadd.f32 %v80, %v175
      %v178 = vld [vmem:[%s4] sm:$0x1]
      %v180 = vperm.slane %v178, 0
      %v182 = vadd.f32 %v177, %v180
      %v183 = vmax.f32 %v182, 0.0
      %v184 = vld [vmem:[%s5] sm:$0xff]
      %v185 = vld [vmem:[%s5 + $0x8] sm:$0xff]
      %v186 = vld [vmem:[%s5 + $0x10] sm:$0xff]
      %v187 = vld [vmem:[%s5 + $0x18] sm:$0xff]
      %v188 = vld [vmem:[%s6] sm:$0x1]
      %v190 = vperm.slane %v188, 0
      %v193 = vsel %vm100, %v183, 0
      %195 = vmatpush.msra.mxu0 0.0
      %196 = vmatpush.msra.mxu0 0.0
      %197 = vmatpush.msra.mxu0 0.0
      %198 = vmatpush.msra.mxu0 0.0
      %199 = vmatpush.msra.mxu0 0.0
      %200 = vmatpush.msra.mxu0 0.0
      %201 = vmatpush.msra.mxu0 0.0
      %202 = vmatpush.msra.mxu0 0.0
      %203 = vmatpush.msra.mxu0 0.0
      %204 = vmatpush.msra.mxu0 0.0
      %205 = vmatpush.msra.mxu0 0.0
      %206 = vmatpush.msra.mxu0 0.0
      %207 = vmatpush.msra.mxu0 %v187
      %208 = vmatpush.msra.mxu0 %v186
      %209 = vmatpush.msra.mxu0 %v185
      %210 = vmatpush.msra.mxu0 %v184
      %211 = vmatmul.f32.gmra.mxu0 %v193
      %v212 = vpop.f32.mrf.mxu0
      %v213 = vadd.f32 %v190, %v212
      %214 = vdwg.mxu0
      %216 = vrot.lane.b32.xlu0 %v213, 64
      %v217 = vpop.permute.xlu0 %216
      %vm219 = vcmask 1048064
      %220 = vst.msk [vmem:[%s10] sm:$0xff] %vm219, %v217
    $region49: #{graphcim_b_forward.6} parent=1 // pred_fallthru
      _
    // Predicated region
    $region50: #{graphcim_b_forward.6} parent=1 // pred_check
      _
    $region51: #{graphcim_b_forward.6} parent=1 // pred_check_branch
      %222 = sbr.rel (0) target = $region53
    $region52: #{graphcim_b_forward.6} parent=1 // pred_region
      _
    $region53: #{graphcim_b_forward.6} parent=1 // pred_fallthru
      _
    // Predicated region
    $region54: #{graphcim_b_forward.6} parent=1 // pred_check
      _
    $region55: #{graphcim_b_forward.6} parent=1 // pred_check_branch
      %224 = sbr.rel (0) target = $region57
    $region56: #{graphcim_b_forward.6} parent=1 // pred_region
      %226 = vsyncadd [#allocation4], 0
      %s228 = sshll.u32 [#allocation3], 4
      %s229 = int_to_ptr.vmem [resolvable:$true] %s228
      %s230 = sshll.u32 %s11, 4
      %s231 = int_to_ptr.hbm [resolvable:$true] %s230
      %233 = dma.vmem_to_hbm [thread:$0]  %s229, 128, %s231, [#allocation4]
    $region57: #{graphcim_b_forward.6} parent=1 // pred_fallthru
      _
    // Predicated region
    $region58: #{graphcim_b_forward.6} parent=1 // pred_check
      _
    $region59: #{graphcim_b_forward.6} parent=1 // pred_check_branch
      %235 = sbr.rel (0) target = $region61
    $region60: #{graphcim_b_forward.6} parent=1 // pred_region
      _
    $region61: #{graphcim_b_forward.6} parent=1 // pred_fallthru
      _
    // Predicated region
    $region62: #{graphcim_b_forward.6} parent=1 // pred_check
      _
    $region63: #{graphcim_b_forward.6} parent=1 // pred_check_branch
      %237 = sbr.rel (0) target = $region65
    $region64: #{graphcim_b_forward.6} parent=1 // pred_region
      _
    $region65: #{graphcim_b_forward.6} parent=1 // pred_fallthru
      _
    // Predicated region
    $region66: #{graphcim_b_forward.6} parent=1 // pred_check
      _
    $region67: #{graphcim_b_forward.6} parent=1 // pred_check_branch
      %239 = sbr.rel (0) target = $region69
    $region68: #{graphcim_b_forward.6} parent=1 // pred_region
      _
    $region69: #{graphcim_b_forward.6} parent=1 // pred_fallthru
      _
    // Predicated region
    $region70: #{graphcim_b_forward.6} parent=1 // pred_check
      _
    $region71: #{graphcim_b_forward.6} parent=1 // pred_check_branch
      %241 = sbr.rel (0) target = $region73
    $region72: #{graphcim_b_forward.6} parent=1 // pred_region
      %243 = dma.done [#allocation4], 128
    $region73: #{graphcim_b_forward.6} parent=1 // pred_fallthru
      _
    // Predicated region
    $region74: #{graphcim_b_forward.6} parent=1 // pred_check
      _
    $region75: #{graphcim_b_forward.6} parent=1 // pred_check_branch
      %245 = sbr.rel (0) target = $region77
    $region76: #{graphcim_b_forward.6} parent=1 // pred_region
      _
    $region77: #{graphcim_b_forward.6} parent=1 // pred_fallthru
      _
    // Predicated region
    $region78: #{graphcim_b_forward.6} parent=1 // pred_check
      _
    $region79: #{graphcim_b_forward.6} parent=1 // pred_check_branch
      %247 = sbr.rel (0) target = $region81
    $region80: #{graphcim_b_forward.6} parent=1 // pred_region
      _
    $region81: #{graphcim_b_forward.6} parent=1 // pred_fallthru
      _
    %248 = vsyncpa [#allocation4], 1

// kernel: graphcim_b_forward.7
$region0: #{graphcim_b_forward.7}
  #allocation0 [shape = 'u32[]', space=smem, size = 0x4, offset = 0x4, fixed_abs, tag = 'smem constant byte address 0x4 - core index']
  #allocation1 [shape = 'u32[72,128]{1,0:T(1,128)}', space=vmem, size = 0x9000, scoped, tag = 'internal scratch']
  #allocation2 [shape = 'f32[1,16,8]{2,1,0:T(8,128)}', space=vmem, size = 0x2000, scoped, tag = 'scratch operand']
  %s0 = inlined_call_operand.vmem [shape: f32[1,16,64], index: 0, kind: input, shape index: {}, may-alias: {0,1}]
  %s1 = inlined_call_operand.vmem [shape: f32[1,16,64], index: 1, kind: input, shape index: {}, may-alias: {0,1}]
  %s2 = inlined_call_operand.vmem [shape: f32[1,16,8], index: 2, kind: input, shape index: {}]
  %s3 = inlined_call_operand.vmem [shape: f32[16,16], index: 3, kind: input, shape index: {}]
  %s4 = inlined_call_operand.vmem [shape: f32[1,8], index: 4, kind: input, shape index: {}]
  %s5 = inlined_call_operand.hbm [shape: f32[1,16,16], index: 5, kind: output, shape index: {0}]
  %s6 = inlined_call_operand.vmem [shape: f32[1,16,8], index: 6, kind: output, shape index: {1}]
  %7 = xla_tuple %s5, %s6
  %s8 = sld [smem:[#allocation0]]
  $region46: #{graphcim_b_forward.7} parent=0
    _
  %s10 = ssub.s32 1, %s8
  %s11 = scalar_select 0, %s10, %s8
  $region1: #{graphcim_b_forward.7} parent=0
    #allocation3 [shape = 'u8[8192]{0}', space=vmem, size = 0x2000, scoped, tag = 'output window, operand 0, single buffered']
    #allocation4 [shape = 's32[1]{0}', space=sflag, size = 0x4, scoped, tag = 'scoped memory for graphcim_b_forward.7']
    %12 = vsyncpa [#allocation4], 0
    // Predicated region
    $region2: #{graphcim_b_forward.7} parent=1 // pred_check
      _
    $region3: #{graphcim_b_forward.7} parent=1 // pred_check_branch
      %14 = sbr.rel (0) target = $region5
    $region4: #{graphcim_b_forward.7} parent=1 // pred_region
      _
    $region5: #{graphcim_b_forward.7} parent=1 // pred_fallthru
      _
    // Predicated region
    $region6: #{graphcim_b_forward.7} parent=1 // pred_check
      _
    $region7: #{graphcim_b_forward.7} parent=1 // pred_check_branch
      %16 = sbr.rel (0) target = $region9
    $region8: #{graphcim_b_forward.7} parent=1 // pred_region
      _
    $region9: #{graphcim_b_forward.7} parent=1 // pred_fallthru
      _
    // Predicated region
    $region10: #{graphcim_b_forward.7} parent=1 // pred_check
      _
    $region11: #{graphcim_b_forward.7} parent=1 // pred_check_branch
      %18 = sbr.rel (0) target = $region13
    $region12: #{graphcim_b_forward.7} parent=1 // pred_region
      _
    $region13: #{graphcim_b_forward.7} parent=1 // pred_fallthru
      _
    // Predicated region
    $region14: #{graphcim_b_forward.7} parent=1 // pred_check
      _
    $region15: #{graphcim_b_forward.7} parent=1 // pred_check_branch
      %20 = sbr.rel (0) target = $region17
    $region16: #{graphcim_b_forward.7} parent=1 // pred_region
      _
    $region17: #{graphcim_b_forward.7} parent=1 // pred_fallthru
      _
    // Predicated region
    $region18: #{graphcim_b_forward.7} parent=1 // pred_check
      _
    $region19: #{graphcim_b_forward.7} parent=1 // pred_check_branch
      %22 = sbr.rel (0) target = $region21
    $region20: #{graphcim_b_forward.7} parent=1 // pred_region
      _
    $region21: #{graphcim_b_forward.7} parent=1 // pred_fallthru
      _
    %p23 = scmp.eq.s32.totalorder 0, 0
    // Predicated region
    $region22: #{graphcim_b_forward.7} parent=1 // pred_check
      %p24 = pneg %p23
    $region23: #{graphcim_b_forward.7} parent=1 // pred_check_branch
      %26 = sbr.rel (%p24) target = $region25
    $region24: #{graphcim_b_forward.7} parent=1 // pred_region
      %vm27 = vcmask 64512
      %28 = vst.msk [vmem:[#allocation2] sm:$0xff] %vm27, 0.0
      %29 = vst.msk [vmem:[#allocation2 + $0x8] sm:$0xff] %vm27, 0.0
    $region25: #{graphcim_b_forward.7} parent=1 // pred_fallthru
      _
    %v30 = vld [vmem:[%s3] sm:$0xff]
    %v31 = vld [vmem:[%s3 + $0x8] sm:$0xff]
    %v32 = vld [vmem:[%s0] sm:$0xff]
    %v33 = vld [vmem:[%s0 + $0x8] sm:$0xff]
    %v34 = vld [vmem:[%s1] sm:$0xff]
    %v35 = vld [vmem:[%s1 + $0x8] sm:$0xff]
    %vm36 = vcmask 523264
    %v38 = vsel %vm36, %v32, 0
    %v41 = vsel %vm36, %v33, 0
    %v44 = vsel %vm36, %v34, 0
    %v47 = vsel %vm36, %v35, 0
    %49 = vmatpush.xpose.msra.mxu0 0.0
    %50 = vmatpush.xpose.msra.mxu0 0.0
    %51 = vmatpush.xpose.msra.mxu0 0.0
    %52 = vmatpush.xpose.msra.mxu0 0.0
    %53 = vmatpush.xpose.msra.mxu0 0.0
    %54 = vmatpush.xpose.msra.mxu0 0.0
    %55 = vmatpush.xpose.msra.mxu0 0.0
    %56 = vmatpush.xpose.msra.mxu0 0.0
    %57 = vmatpush.xpose.msra.mxu0 0.0
    %58 = vmatpush.xpose.msra.mxu0 0.0
    %59 = vmatpush.xpose.msra.mxu0 0.0
    %60 = vmatpush.xpose.msra.mxu0 0.0
    %61 = vmatpush.xpose.msra.mxu0 0.0
    %62 = vmatpush.xpose.msra.mxu0 0.0
    %63 = vmatpush.xpose.msra.mxu0 %v47
    %64 = vmatpush.xpose.msra.mxu0 %v44
    %65 = vmatmul.f32.gmra.mxu0 %v38
    %v66 = vpop.f32.mrf.mxu0
    %v67 = vadd.f32 0.0, %v66
    %68 = vmatmul.f32.gmra.mxu0 %v41
    %v69 = vpop.f32.mrf.mxu0
    %v70 = vadd.f32 0.0, %v69
    %71 = vdwg.mxu0
    %vm72 = vcmask 130048
    %73 = vst.msk [vmem:[#allocation3] sm:$0xff] %vm72, %v67
    %74 = vst.msk [vmem:[#allocation3 + $0x8] sm:$0xff] %vm72, %v70
    %v75 = vld [vmem:[#allocation2] sm:$0xff]
    %v76 = vld [vmem:[#allocation2 + $0x8] sm:$0xff]
    %v77 = vld [vmem:[%s2] sm:$0xff]
    %v78 = vld [vmem:[%s2 + $0x8] sm:$0xff]
    %v80 = vsel %vm72, %v30, 0
    %v83 = vsel %vm72, %v31, 0
    %85 = vmatpush.msra.mxu0 0.0
    %86 = vmatpush.msra.mxu0 0.0
    %87 = vmatpush.msra.mxu0 0.0
    %88 = vmatpush.msra.mxu0 0.0
    %89 = vmatpush.msra.mxu0 0.0
    %90 = vmatpush.msra.mxu0 0.0
    %91 = vmatpush.msra.mxu0 0.0
    %92 = vmatpush.msra.mxu0 0.0
    %93 = vmatpush.msra.mxu0 0.0
    %94 = vmatpush.msra.mxu0 0.0
    %95 = vmatpush.msra.mxu0 0.0
    %96 = vmatpush.msra.mxu0 0.0
    %97 = vmatpush.msra.mxu0 0.0
    %98 = vmatpush.msra.mxu0 0.0
    %99 = vmatpush.msra.mxu0 %v78
    %100 = vmatpush.msra.mxu0 %v77
    %101 = vmatmul.f32.gmra.mxu0 %v80
    %v102 = vpop.f32.mrf.mxu0
    %v103 = vadd.f32 0.0, %v102
    %104 = vmatmul.f32.gmra.mxu0 %v83
    %v105 = vpop.f32.mrf.mxu0
    %v106 = vadd.f32 0.0, %v105
    %107 = vdwg.mxu0
    %v108 = vadd.f32 %v75, %v103
    %v109 = vadd.f32 %v76, %v106
    %vm110 = vcmask 64512
    %111 = vst.msk [vmem:[#allocation2] sm:$0xff] %vm110, %v108
    %112 = vst.msk [vmem:[#allocation2 + $0x8] sm:$0xff] %vm110, %v109
    // Predicated region
    $region26: #{graphcim_b_forward.7} parent=1 // pred_check
      %p113 = pneg %p23
    $region27: #{graphcim_b_forward.7} parent=1 // pred_check_branch
      %115 = sbr.rel (%p113) target = $region29
    $region28: #{graphcim_b_forward.7} parent=1 // pred_region
      %v116 = vld [vmem:[#allocation2] sm:$0xff]
      %v117 = vld [vmem:[#allocation2 + $0x8] sm:$0xff]
      %v118 = vld [vmem:[%s4] sm:$0x1]
      %v120 = vperm.slane %v118, 0
      %v122 = vadd.f32 %v116, %v120
      %v123 = vadd.f32 %v117, %v120
      %124 = vst.msk [vmem:[%s6] sm:$0xff] %vm110, %v122
      %125 = vst.msk [vmem:[%s6 + $0x8] sm:$0xff] %vm110, %v123
    $region29: #{graphcim_b_forward.7} parent=1 // pred_fallthru
      _
    // Predicated region
    $region30: #{graphcim_b_forward.7} parent=1 // pred_check
      _
    $region31: #{graphcim_b_forward.7} parent=1 // pred_check_branch
      %127 = sbr.rel (0) target = $region33
    $region32: #{graphcim_b_forward.7} parent=1 // pred_region
      %129 = vsyncadd [#allocation4], 0
      %s130 = sshll.u32 [#allocation3], 4
      %s131 = int_to_ptr.vmem [resolvable:$true] %s130
      %s132 = sshll.u32 %s5, 4
      %s133 = int_to_ptr.hbm [resolvable:$true] %s132
      %138 = dma.vmem_to_hbm [thread:$0]  %s131, 256, %s133, [#allocation4], 128, 128, 8
    $region33: #{graphcim_b_forward.7} parent=1 // pred_fallthru
      _
    // Predicated region
    $region34: #{graphcim_b_forward.7} parent=1 // pred_check
      _
    $region35: #{graphcim_b_forward.7} parent=1 // pred_check_branch
      %140 = sbr.rel (0) target = $region37
    $region36: #{graphcim_b_forward.7} parent=1 // pred_region
      _
    $region37: #{graphcim_b_forward.7} parent=1 // pred_fallthru
      _
    // Predicated region
    $region38: #{graphcim_b_forward.7} parent=1 // pred_check
      _
    $region39: #{graphcim_b_forward.7} parent=1 // pred_check_branch
      %142 = sbr.rel (0) target = $region41
    $region40: #{graphcim_b_forward.7} parent=1 // pred_region
      %144 = dma.done [#allocation4], 256
    $region41: #{graphcim_b_forward.7} parent=1 // pred_fallthru
      _
    // Predicated region
    $region42: #{graphcim_b_forward.7} parent=1 // pred_check
      _
    $region43: #{graphcim_b_forward.7} parent=1 // pred_check_branch
      %146 = sbr.rel (0) target = $region45
    $region44: #{graphcim_b_forward.7} parent=1 // pred_region
      _
    $region45: #{graphcim_b_forward.7} parent=1 // pred_fallthru
      _
    %147 = vsyncpa [#allocation4], 1

</llo_original>
